<compile_context>
chip_gen: v7x
topology: tpu7x:2x2x1
jax: 0.10.0
libtpu: 0.0.40
codegen_flags: <defaults>
</compile_context>

<pallas_src>
import functools

import jax
import jax.numpy as jnp
from jax.experimental import pallas as pl
from jax.experimental.pallas import tpu as pltpu


# ---------------------------------------------------------------------------
# in-kernel helper: 3x3 reflect-pad conv + GroupNorm(1, C) + PReLU
# ---------------------------------------------------------------------------
def _conv_gn_prelu(x, wmat, bias, gamma, beta, alpha, fl, ll, nf, nl,
                   pad_scr, H, W):
    """x: (Cin, H*W) value, wmat: (Cout, 9*Cin), per-channel params (Cout, 1),
    fl/ll/nf/nl: (1, H*W) f32 first/last-column indicators and complements,
    pad_scr: VMEM scratch (Cin, (H+4)*W).  Returns (Cout, H*W)."""
    Cin, HW = x.shape
    OFF = W  # one row of slack in front of the row-padded image

    zrow = jnp.zeros((Cin, W), jnp.float32)
    # slack rows (only read at masked-out positions; keep them finite so the
    # 0-multiply in the blend cannot produce NaN from uninitialized VMEM)
    pad_scr[:, 0:W] = zrow
    pad_scr[:, OFF + (H + 2) * W:OFF + (H + 3) * W] = zrow
    # row-reflect-padded image, rows a=0..H+1, a -> x[reflect(a-1)]
    pad_scr[:, OFF:OFF + W] = x[:, W:2 * W]                          # row -1 -> 1
    pad_scr[:, OFF + W:OFF + W + HW] = x                             # rows 0..H-1
    pad_scr[:, OFF + W + HW:OFF + 2 * W + HW] = x[:, (H - 2) * W:(H - 1) * W]  # H -> H-2

    taps = []
    for kh in range(3):
        s0 = OFF + kh * W
        m1 = pad_scr[:, s0 - 1:s0 - 1 + HW]   # column j-1 (wrong at j=0, blended)
        z0 = pad_scr[:, s0:s0 + HW]           # column j
        p1 = pad_scr[:, s0 + 1:s0 + 1 + HW]   # column j+1 (wrong at j=W-1, blended)
        taps.append(fl * p1 + nf * m1)        # kw=0: reflect col -1 -> 1
        taps.append(z0)                       # kw=1
        taps.append(ll * m1 + nl * p1)        # kw=2: reflect col W -> W-2
    patches = jnp.concatenate(taps, axis=0)                  # (9*Cin, H*W)

    # single im2col matmul on the MXU
    acc = jnp.dot(wmat, patches, preferred_element_type=jnp.float32)  # (Cout, HW)
    acc = acc + bias

    # GroupNorm(num_groups=1): one-pass mean / var over all C*H*W elements
    n = acc.shape[0] * acc.shape[1]
    mean = jnp.sum(acc) / n
    var = jnp.sum(acc * acc) / n - mean * mean
    y = (acc - mean) * jax.lax.rsqrt(var + 1e-5)
    y = y * gamma + beta

    # PReLU with per-channel alpha
    return jnp.where(y >= 0.0, y, alpha * y)


# ---------------------------------------------------------------------------
# fused UpBlock kernel (one batch element per grid step)
# ---------------------------------------------------------------------------
def _upblock_kernel(x_ref, edge_ref, w1_ref, w2_ref, wup_ref, p_ref, o_ref,
                    pad1_scr, pad2_scr, up_scr, *, H, W):
    HW = H * W
    # boundary masks, computed once and reused by both convs and the up-conv
    fl = edge_ref[0:1, :]     # (1, HW) 1.0 where j == 0
    ll = edge_ref[1:2, :]     # (1, HW) 1.0 where j == W-1
    nf = 1.0 - fl
    nl = 1.0 - ll

    # ConvBlock 1: Cin -> Cout
    y1 = _conv_gn_prelu(x_ref[0], w1_ref[...],
                        p_ref[:, 0:1], p_ref[:, 1:2], p_ref[:, 2:3], p_ref[:, 3:4],
                        fl, ll, nf, nl, pad1_scr, H, W)
    # ConvBlock 2: Cout -> Cout
    y2 = _conv_gn_prelu(y1, w2_ref[...],
                        p_ref[:, 4:5], p_ref[:, 5:6], p_ref[:, 6:7], p_ref[:, 7:8],
                        fl, ll, nf, nl, pad2_scr, H, W)

    # ConvTranspose2d(k=3, stride=2, padding=1, output_padding=1):
    # out[2i+a, 2j+b] depends on x[i, j], x[i, j+1], x[i+1, j], x[i+1, j+1];
    # stack the four shifted inputs and apply one (4C, 4C) block matrix.
    C = y2.shape[0]
    up_scr[:, 0:HW] = y2
    up_scr[:, HW:HW + 2 * W] = jnp.zeros((C, 2 * W), jnp.float32)  # zero rows H, H+1
    x00 = y2
    x01 = nl * up_scr[:, 1:1 + HW]           # x[i, j+1]   (0 past right edge)
    x10 = up_scr[:, W:W + HW]                # x[i+1, j]   (0 past bottom edge)
    x11 = nl * up_scr[:, W + 1:W + 1 + HW]   # x[i+1, j+1]
    xs = jnp.concatenate([x00, x01, x10, x11], axis=0)        # (4C, HW)
    planes = jnp.dot(wup_ref[...], xs,
                     preferred_element_type=jnp.float32)      # (4C, HW)

    b_up = p_ref[:, 8:9]
    o_ref[0, 0] = planes[0 * C:1 * C] + b_up   # even row / even col
    o_ref[0, 1] = planes[1 * C:2 * C] + b_up   # even row / odd  col
    o_ref[0, 2] = planes[2 * C:3 * C] + b_up   # odd  row / even col
    o_ref[0, 3] = planes[3 * C:4 * C] + b_up   # odd  row / odd  col


# ---------------------------------------------------------------------------
# wrapper-side weight packing
# ---------------------------------------------------------------------------
def _build_up_matrix(w_up):
    """w_up: (C, C, 3, 3) in PyTorch ConvTranspose2d layout [c_in, c_out, kh, kw].
    Returns the (4C, 4C) parity-plane block matrix."""
    C = w_up.shape[0]
    z = jnp.zeros((C, C), jnp.float32)
    t = lambda kh, kw: w_up[:, :, kh, kw].T   # (c_out, c_in)
    # plane rows: [even/even, even/odd, odd/even, odd/odd]
    # shifted-input columns: [x(i,j), x(i,j+1), x(i+1,j), x(i+1,j+1)]
    rows = [
        jnp.concatenate([t(1, 1), z,       z,       z      ], axis=1),
        jnp.concatenate([t(1, 2), t(1, 0), z,       z      ], axis=1),
        jnp.concatenate([t(2, 1), z,       t(0, 1), z      ], axis=1),
        jnp.concatenate([t(2, 2), t(2, 0), t(0, 2), t(0, 0)], axis=1),
    ]
    return jnp.concatenate(rows, axis=0).astype(jnp.float32)


# ---------------------------------------------------------------------------
# UpBlock forward
# ---------------------------------------------------------------------------
def upblock_forward(params, x):
    """x: (B, Cin, H, W) NCHW -> (B, Cout, 2H, 2W), matching the PyTorch module."""
    B, Cin, H, W = x.shape
    Cout = params["conv1_w"].shape[0]
    HW = H * W

    x_flat = x.reshape(B, Cin, HW).astype(jnp.float32)   # free, contiguous view

    # Conv2d weights (Cout, Cin, 3, 3) -> (Cout, 9*Cin), column = (kh*3+kw)*Cin+ci
    w1m = jnp.transpose(params["conv1_w"], (0, 2, 3, 1)).reshape(Cout, 9 * Cin)
    w2m = jnp.transpose(params["conv2_w"], (0, 2, 3, 1)).reshape(Cout, 9 * Cout)
    wupm = _build_up_matrix(params["up_w"])               # (4*Cout, 4*Cout)

    # pack all per-channel vectors into one (Cout, 9) block
    pk = jnp.stack([params["conv1_b"], params["conv1_gamma"], params["conv1_beta"],
                    params["conv1_alpha"], params["conv2_b"], params["conv2_gamma"],
                    params["conv2_beta"], params["conv2_alpha"], params["up_b"]],
                   axis=1).astype(jnp.float32)

    # first/last-column indicators for the flat (lane) spatial layout
    col = jax.lax.broadcasted_iota(jnp.int32, (1, HW), 1) % W
    edge = jnp.concatenate([(col == 0).astype(jnp.float32),
                            (col == W - 1).astype(jnp.float32)], axis=0)  # (2, HW)

    kernel = functools.partial(_upblock_kernel, H=H, W=W)
    out = pl.pallas_call(
        kernel,
        out_shape=jax.ShapeDtypeStruct((B, 4, Cout, HW), jnp.float32),
        grid_spec=pltpu.PrefetchScalarGridSpec(
            num_scalar_prefetch=0,
            grid=(B,),
            in_specs=[
                pl.BlockSpec((1, Cin, HW), lambda b: (b, 0, 0)),
                pl.BlockSpec((2, HW), lambda b: (0, 0)),
                pl.BlockSpec((Cout, 9 * Cin), lambda b: (0, 0)),
                pl.BlockSpec((Cout, 9 * Cout), lambda b: (0, 0)),
                pl.BlockSpec((4 * Cout, 4 * Cout), lambda b: (0, 0)),
                pl.BlockSpec((Cout, 9), lambda b: (0, 0)),
            ],
            out_specs=pl.BlockSpec((1, 4, Cout, HW), lambda b: (b, 0, 0, 0)),
            # NOTE: whole-image-per-step VMEM footprint here is ~60 KB; for
            # production feature maps add an H-row tiling grid axis.
            scratch_shapes=[
                pltpu.VMEM((Cin, (H + 4) * W), jnp.float32),   # conv1 row-padded
                pltpu.VMEM((Cout, (H + 4) * W), jnp.float32),  # conv2 row-padded
                pltpu.VMEM((Cout, (H + 2) * W), jnp.float32),  # upconv zero-padded
            ],
        ),
        compiler_params=pltpu.CompilerParams(
            dimension_semantics=("parallel",)),
    )(x_flat, edge, w1m, w2m, wupm, pk)

    # interleave parity planes: (B, 2a+b, c, i*W+j) -> (B, c, 2i+a, 2j+b)
    out = out.reshape(B, 2, 2, Cout, H, W)
    out = jnp.transpose(out, (0, 3, 4, 1, 5, 2))
    out = out.reshape(B, Cout, 2 * H, 2 * W)
    # TODO(synk): Dropout2d is identity in inference mode; training-mode channel
    # dropout (with 1/(1-p) scaling) is not implemented here.
    return out


# ---------------------------------------------------------------------------
# pure-JAX reference (for correctness check in __main__)
# ---------------------------------------------------------------------------
def _upblock_reference(params, x):
    hi = jax.lax.Precision.HIGHEST

    def conv_block(x, w, b, gamma, beta, alpha):
        xp = jnp.pad(x, ((0, 0), (0, 0), (1, 1), (1, 1)), mode="reflect")
        y = jax.lax.conv_general_dilated(
            xp, w, window_strides=(1, 1), padding="VALID",
            dimension_numbers=("NCHW", "OIHW", "NCHW"), precision=hi)
        y = y + b[None, :, None, None]
        mean = jnp.mean(y, axis=(1, 2, 3), keepdims=True)
        var = jnp.var(y, axis=(1, 2, 3), keepdims=True)
        y = (y - mean) * jax.lax.rsqrt(var + 1e-5)
        y = y * gamma[None, :, None, None] + beta[None, :, None, None]
        return jnp.where(y >= 0, y, alpha[None, :, None, None] * y)

    y = conv_block(x, params["conv1_w"], params["conv1_b"], params["conv1_gamma"],
                   params["conv1_beta"], params["conv1_alpha"])
    y = conv_block(y, params["conv2_w"], params["conv2_b"], params["conv2_gamma"],
                   params["conv2_beta"], params["conv2_alpha"])
    # ConvTranspose2d(k=3, s=2, p=1, output_padding=1) == conv with
    # lhs_dilation=2, padding (k-1-p, k-1-p+output_padding), rot180 + (in,out) swap.
    w = params["up_w"][:, :, ::-1, ::-1]                       # (ci, co, kh, kw) flipped
    y = jax.lax.conv_general_dilated(
        y, jnp.transpose(w, (1, 0, 2, 3)), window_strides=(1, 1),
        padding=((1, 2), (1, 2)), lhs_dilation=(2, 2),
        dimension_numbers=("NCHW", "OIHW", "NCHW"), precision=hi)
    return y + params["up_b"][None, :, None, None]


# ---------------------------------------------------------------------------
# parameter init (PyTorch-compatible layouts)
# ---------------------------------------------------------------------------
def init_upblock_params(key, channels_in, channels_out):
    ks = jax.random.split(key, 6)
    s1 = 1.0 / (channels_in * 9) ** 0.5
    s2 = 1.0 / (channels_out * 9) ** 0.5
    return {
        # nn.Conv2d weight layout: (Cout, Cin, kh, kw)
        "conv1_w": jax.random.uniform(ks[0], (channels_out, channels_in, 3, 3),
                                      jnp.float32, -s1, s1),
        "conv1_b": jax.random.uniform(ks[1], (channels_out,), jnp.float32, -s1, s1),
        "conv1_gamma": jnp.ones((channels_out,), jnp.float32),
        "conv1_beta": jnp.zeros((channels_out,), jnp.float32),
        "conv1_alpha": jnp.full((channels_out,), 0.25, jnp.float32),
        "conv2_w": jax.random.uniform(ks[2], (channels_out, channels_out, 3, 3),
                                      jnp.float32, -s2, s2),
        "conv2_b": jax.random.uniform(ks[3], (channels_out,), jnp.float32, -s2, s2),
        "conv2_gamma": jnp.ones((channels_out,), jnp.float32),
        "conv2_beta": jnp.zeros((channels_out,), jnp.float32),
        "conv2_alpha": jnp.full((channels_out,), 0.25, jnp.float32),
        # nn.ConvTranspose2d weight layout: (Cin, Cout, kh, kw)
        "up_w": jax.random.uniform(ks[4], (channels_out, channels_out, 3, 3),
                                   jnp.float32, -s2, s2),
        "up_b": jax.random.uniform(ks[5], (channels_out,), jnp.float32, -s2, s2),
    }


if __name__ == "__main__":
    B, C_IN, C_OUT, H, W = 2, 4, 8, 16, 16
    key = jax.random.PRNGKey(0)
    k_params, k_x = jax.random.split(key)
    params = init_upblock_params(k_params, C_IN, C_OUT)
    x = jax.random.normal(k_x, (B, C_IN, H, W), jnp.float32)

    out = jax.jit(upblock_forward)(params, x)
    out = jax.block_until_ready(out)
    assert out.shape == (B, C_OUT, 2 * H, 2 * W), out.shape
    assert bool(jnp.all(jnp.isfinite(out)))

    # correctness vs. a pure-JAX reference of the PyTorch module (loose
    # tolerance to absorb MXU vs. XLA-conv accumulation differences)
    ref = _upblock_reference(params, x.astype(jnp.float32))
    err = float(jnp.max(jnp.abs(out - ref)))
    scale = max(float(jnp.max(jnp.abs(ref))), 1.0)
    assert err <= 2e-2 * scale, (err, scale)

    print("KERNEL_OK")
</pallas_src>

<mosaic_0001>
module attributes {stable_mosaic.version = 11 : i64} {
  func.func @_upblock_kernel(%arg0: i32, %arg1: memref<1x4x256xf32, #tpu.memory_space<vmem>>, %arg2: memref<2x256xf32, #tpu.memory_space<vmem>>, %arg3: memref<8x36xf32, #tpu.memory_space<vmem>>, %arg4: memref<8x72xf32, #tpu.memory_space<vmem>>, %arg5: memref<32x32xf32, #tpu.memory_space<vmem>>, %arg6: memref<8x9xf32, #tpu.memory_space<vmem>>, %arg7: memref<1x4x8x256xf32, #tpu.memory_space<vmem>>, %arg8: memref<4x320xf32, #tpu.memory_space<vmem>>, %arg9: memref<8x320xf32, #tpu.memory_space<vmem>>, %arg10: memref<8x288xf32, #tpu.memory_space<vmem>>) attributes {dimension_semantics = [#tpu.dimension_semantics<parallel>], iteration_bounds = array<i64: 2>, scalar_prefetch = 0 : i64, scratch_operands = 3 : i64, tpu.core_type = #tpu.core_type<tc>, window_params = [{transform_indices = @transform_0, window_bounds = array<i64: 1, 4, 256>}, {pipeline_mode = #tpu.pipeline_mode<synchronous>, transform_indices = @transform_1, window_bounds = array<i64: 2, 256>}, {pipeline_mode = #tpu.pipeline_mode<synchronous>, transform_indices = @transform_2, window_bounds = array<i64: 8, 36>}, {pipeline_mode = #tpu.pipeline_mode<synchronous>, transform_indices = @transform_3, window_bounds = array<i64: 8, 72>}, {pipeline_mode = #tpu.pipeline_mode<synchronous>, transform_indices = @transform_4, window_bounds = array<i64: 32, 32>}, {pipeline_mode = #tpu.pipeline_mode<synchronous>, transform_indices = @transform_5, window_bounds = array<i64: 8, 9>}, {transform_indices = @transform_6, window_bounds = array<i64: 1, 4, 8, 256>}]} {
    %c0 = arith.constant 0 : index
    %c0_0 = arith.constant 0 : index
    %0 = vector.load %arg2[%c0, %c0_0] : memref<2x256xf32, #tpu.memory_space<vmem>>, vector<1x256xf32>
    %c1 = arith.constant 1 : index
    %c0_1 = arith.constant 0 : index
    %1 = vector.load %arg2[%c1, %c0_1] : memref<2x256xf32, #tpu.memory_space<vmem>>, vector<1x256xf32>
    %cst = arith.constant 1.000000e+00 : f32
    %2 = vector.broadcast %cst : f32 to vector<1x256xf32>
    %3 = arith.subf %2, %0 : vector<1x256xf32>
    %cst_2 = arith.constant 1.000000e+00 : f32
    %4 = vector.broadcast %cst_2 : f32 to vector<1x256xf32>
    %5 = arith.subf %4, %1 : vector<1x256xf32>
    %c0_3 = arith.constant 0 : index
    %c0_4 = arith.constant 0 : index
    %c0_5 = arith.constant 0 : index
    %6 = vector.load %arg1[%c0_3, %c0_4, %c0_5] : memref<1x4x256xf32, #tpu.memory_space<vmem>>, vector<1x4x256xf32>
    %7 = vector.shape_cast %6 : vector<1x4x256xf32> to vector<4x256xf32>
    %c0_6 = arith.constant 0 : index
    %c0_7 = arith.constant 0 : index
    %8 = vector.load %arg3[%c0_6, %c0_7] : memref<8x36xf32, #tpu.memory_space<vmem>>, vector<8x36xf32>
    %c0_8 = arith.constant 0 : index
    %c0_9 = arith.constant 0 : index
    %9 = vector.load %arg6[%c0_8, %c0_9] : memref<8x9xf32, #tpu.memory_space<vmem>>, vector<8x1xf32>
    %c0_10 = arith.constant 0 : index
    %c1_11 = arith.constant 1 : index
    %10 = vector.load %arg6[%c0_10, %c1_11] : memref<8x9xf32, #tpu.memory_space<vmem>>, vector<8x1xf32>
    %c0_12 = arith.constant 0 : index
    %c2 = arith.constant 2 : index
    %11 = vector.load %arg6[%c0_12, %c2] : memref<8x9xf32, #tpu.memory_space<vmem>>, vector<8x1xf32>
    %c0_13 = arith.constant 0 : index
    %c3 = arith.constant 3 : index
    %12 = vector.load %arg6[%c0_13, %c3] : memref<8x9xf32, #tpu.memory_space<vmem>>, vector<8x1xf32>
    %cst_14 = arith.constant 0.000000e+00 : f32
    %13 = vector.broadcast %cst_14 : f32 to vector<4x16xf32>
    %c0_15 = arith.constant 0 : index
    %c0_16 = arith.constant 0 : index
    %14 = vector.load %arg8[%c0_15, %c0_16] : memref<4x320xf32, #tpu.memory_space<vmem>>, vector<4x16xf32>
    tpu.vector_store %arg8[%c0_15, %c0_16], %13 {strides = array<i32>} : memref<4x320xf32, #tpu.memory_space<vmem>>, vector<4x16xf32>,
    %c0_17 = arith.constant 0 : index
    %c304 = arith.constant 304 : index
    %15 = vector.load %arg8[%c0_17, %c304] : memref<4x320xf32, #tpu.memory_space<vmem>>, vector<4x16xf32>
    tpu.vector_store %arg8[%c0_17, %c304], %13 {strides = array<i32>} : memref<4x320xf32, #tpu.memory_space<vmem>>, vector<4x16xf32>,
    %16 = vector.extract_strided_slice %7 {offsets = [0, 16], sizes = [4, 16], strides = [1, 1]} : vector<4x256xf32> to vector<4x16xf32>
    %c0_18 = arith.constant 0 : index
    %c16 = arith.constant 16 : index
    %17 = vector.load %arg8[%c0_18, %c16] : memref<4x320xf32, #tpu.memory_space<vmem>>, vector<4x16xf32>
    tpu.vector_store %arg8[%c0_18, %c16], %16 {strides = array<i32>} : memref<4x320xf32, #tpu.memory_space<vmem>>, vector<4x16xf32>,
    %c0_19 = arith.constant 0 : index
    %c32 = arith.constant 32 : index
    %18 = vector.load %arg8[%c0_19, %c32] : memref<4x320xf32, #tpu.memory_space<vmem>>, vector<4x256xf32>
    tpu.vector_store %arg8[%c0_19, %c32], %7 {strides = array<i32>} : memref<4x320xf32, #tpu.memory_space<vmem>>, vector<4x256xf32>,
    %19 = vector.extract_strided_slice %7 {offsets = [0, 224], sizes = [4, 16], strides = [1, 1]} : vector<4x256xf32> to vector<4x16xf32>
    %c0_20 = arith.constant 0 : index
    %c288 = arith.constant 288 : index
    %20 = vector.load %arg8[%c0_20, %c288] : memref<4x320xf32, #tpu.memory_space<vmem>>, vector<4x16xf32>
    tpu.vector_store %arg8[%c0_20, %c288], %19 {strides = array<i32>} : memref<4x320xf32, #tpu.memory_space<vmem>>, vector<4x16xf32>,
    %c0_21 = arith.constant 0 : index
    %c15 = arith.constant 15 : index
    %21 = vector.load %arg8[%c0_21, %c15] : memref<4x320xf32, #tpu.memory_space<vmem>>, vector<4x256xf32>
    %c0_22 = arith.constant 0 : index
    %c16_23 = arith.constant 16 : index
    %22 = vector.load %arg8[%c0_22, %c16_23] : memref<4x320xf32, #tpu.memory_space<vmem>>, vector<4x256xf32>
    %c0_24 = arith.constant 0 : index
    %c17 = arith.constant 17 : index
    %23 = vector.load %arg8[%c0_24, %c17] : memref<4x320xf32, #tpu.memory_space<vmem>>, vector<4x256xf32>
    %24 = vector.broadcast %0 : vector<1x256xf32> to vector<4x256xf32>
    %25 = arith.mulf %24, %23 : vector<4x256xf32>
    %26 = vector.broadcast %3 : vector<1x256xf32> to vector<4x256xf32>
    %27 = arith.mulf %26, %21 : vector<4x256xf32>
    %28 = arith.addf %25, %27 : vector<4x256xf32>
    %29 = vector.broadcast %1 : vector<1x256xf32> to vector<4x256xf32>
    %30 = arith.mulf %29, %21 : vector<4x256xf32>
    %31 = vector.broadcast %5 : vector<1x256xf32> to vector<4x256xf32>
    %32 = arith.mulf %31, %23 : vector<4x256xf32>
    %33 = arith.addf %30, %32 : vector<4x256xf32>
    %c0_25 = arith.constant 0 : index
    %c31 = arith.constant 31 : index
    %34 = vector.load %arg8[%c0_25, %c31] : memref<4x320xf32, #tpu.memory_space<vmem>>, vector<4x256xf32>
    %c0_26 = arith.constant 0 : index
    %c32_27 = arith.constant 32 : index
    %35 = vector.load %arg8[%c0_26, %c32_27] : memref<4x320xf32, #tpu.memory_space<vmem>>, vector<4x256xf32>
    %c0_28 = arith.constant 0 : index
    %c33 = arith.constant 33 : index
    %36 = vector.load %arg8[%c0_28, %c33] : memref<4x320xf32, #tpu.memory_space<vmem>>, vector<4x256xf32>
    %37 = vector.broadcast %0 : vector<1x256xf32> to vector<4x256xf32>
    %38 = arith.mulf %37, %36 : vector<4x256xf32>
    %39 = vector.broadcast %3 : vector<1x256xf32> to vector<4x256xf32>
    %40 = arith.mulf %39, %34 : vector<4x256xf32>
    %41 = arith.addf %38, %40 : vector<4x256xf32>
    %42 = vector.broadcast %1 : vector<1x256xf32> to vector<4x256xf32>
    %43 = arith.mulf %42, %34 : vector<4x256xf32>
    %44 = vector.broadcast %5 : vector<1x256xf32> to vector<4x256xf32>
    %45 = arith.mulf %44, %36 : vector<4x256xf32>
    %46 = arith.addf %43, %45 : vector<4x256xf32>
    %c0_29 = arith.constant 0 : index
    %c47 = arith.constant 47 : index
    %47 = vector.load %arg8[%c0_29, %c47] : memref<4x320xf32, #tpu.memory_space<vmem>>, vector<4x256xf32>
    %c0_30 = arith.constant 0 : index
    %c48 = arith.constant 48 : index
    %48 = vector.load %arg8[%c0_30, %c48] : memref<4x320xf32, #tpu.memory_space<vmem>>, vector<4x256xf32>
    %c0_31 = arith.constant 0 : index
    %c49 = arith.constant 49 : index
    %49 = vector.load %arg8[%c0_31, %c49] : memref<4x320xf32, #tpu.memory_space<vmem>>, vector<4x256xf32>
    %50 = vector.broadcast %0 : vector<1x256xf32> to vector<4x256xf32>
    %51 = arith.mulf %50, %49 : vector<4x256xf32>
    %52 = vector.broadcast %3 : vector<1x256xf32> to vector<4x256xf32>
    %53 = arith.mulf %52, %47 : vector<4x256xf32>
    %54 = arith.addf %51, %53 : vector<4x256xf32>
    %55 = vector.broadcast %1 : vector<1x256xf32> to vector<4x256xf32>
    %56 = arith.mulf %55, %47 : vector<4x256xf32>
    %57 = vector.broadcast %5 : vector<1x256xf32> to vector<4x256xf32>
    %58 = arith.mulf %57, %49 : vector<4x256xf32>
    %59 = arith.addf %56, %58 : vector<4x256xf32>
    %60 = tpu.concatenate %28, %22, %33, %41, %35, %46, %54, %48, %59 in 0 : vector<4x256xf32>, vector<4x256xf32>, vector<4x256xf32>, vector<4x256xf32>, vector<4x256xf32>, vector<4x256xf32>, vector<4x256xf32>, vector<4x256xf32>, vector<4x256xf32> -> vector<36x256xf32>
    %cst_32 = arith.constant dense<0.000000e+00> : vector<8x256xf32>
    %61 = tpu.matmul %8, %60, %cst_32 {dimension_numbers = #tpu.dot_dimension_numbers<[1], [0], [0], [1], [0, 0, 1, 1], [], []>} : vector<8x36xf32>, vector<36x256xf32>, vector<8x256xf32> -> vector<8x256xf32>
    %62 = vector.broadcast %9 : vector<8x1xf32> to vector<8x256xf32>
    %63 = arith.addf %61, %62 : vector<8x256xf32>
    %64 = vector.shape_cast %63 : vector<8x256xf32> to vector<1x8x256xf32>
    %cst_33 = arith.constant dense<0.000000e+00> : vector<1xf32>
    %65 = vector.multi_reduction <add>, %64, %cst_33 [1, 2] : vector<1x8x256xf32> to vector<1xf32>
    %66 = vector.shape_cast %65 : vector<1xf32> to vector<1x1x1xf32>
    %67 = vector.extract %66[0, 0, 0] : f32 from vector<1x1x1xf32>
    %cst_34 = arith.constant 2.048000e+03 : f32
    %68 = arith.divf %67, %cst_34 : f32
    %69 = arith.mulf %63, %63 : vector<8x256xf32>
    %70 = vector.shape_cast %69 : vector<8x256xf32> to vector<1x8x256xf32>
    %cst_35 = arith.constant dense<0.000000e+00> : vector<1xf32>
    %71 = vector.multi_reduction <add>, %70, %cst_35 [1, 2] : vector<1x8x256xf32> to vector<1xf32>
    %72 = vector.shape_cast %71 : vector<1xf32> to vector<1x1x1xf32>
    %73 = vector.extract %72[0, 0, 0] : f32 from vector<1x1x1xf32>
    %cst_36 = arith.constant 2.048000e+03 : f32
    %74 = arith.divf %73, %cst_36 : f32
    %75 = arith.mulf %68, %68 : f32
    %76 = arith.subf %74, %75 : f32
    %77 = vector.broadcast %68 : f32 to vector<8x256xf32>
    %78 = arith.subf %63, %77 : vector<8x256xf32>
    %cst_37 = arith.constant 9.99999974E-6 : f32
    %79 = arith.addf %76, %cst_37 : f32
    %80 = math.rsqrt %79 : f32
    %81 = vector.broadcast %80 : f32 to vector<8x256xf32>
    %82 = arith.mulf %78, %81 : vector<8x256xf32>
    %83 = vector.broadcast %10 : vector<8x1xf32> to vector<8x256xf32>
    %84 = arith.mulf %82, %83 : vector<8x256xf32>
    %85 = vector.broadcast %11 : vector<8x1xf32> to vector<8x256xf32>
    %86 = arith.addf %84, %85 : vector<8x256xf32>
    %cst_38 = arith.constant 0.000000e+00 : f32
    %87 = vector.broadcast %cst_38 : f32 to vector<8x256xf32>
    %88 = arith.cmpf oge, %86, %87 : vector<8x256xf32>
    %89 = vector.broadcast %12 : vector<8x1xf32> to vector<8x256xf32>
    %90 = arith.mulf %89, %86 : vector<8x256xf32>
    %91 = arith.select %88, %86, %90 : vector<8x256xi1>, vector<8x256xf32>
    %c0_39 = arith.constant 0 : index
    %c0_40 = arith.constant 0 : index
    %92 = vector.load %arg4[%c0_39, %c0_40] : memref<8x72xf32, #tpu.memory_space<vmem>>, vector<8x72xf32>
    %c0_41 = arith.constant 0 : index
    %c4 = arith.constant 4 : index
    %93 = vector.load %arg6[%c0_41, %c4] : memref<8x9xf32, #tpu.memory_space<vmem>>, vector<8x1xf32>
    %c0_42 = arith.constant 0 : index
    %c5 = arith.constant 5 : index
    %94 = vector.load %arg6[%c0_42, %c5] : memref<8x9xf32, #tpu.memory_space<vmem>>, vector<8x1xf32>
    %c0_43 = arith.constant 0 : index
    %c6 = arith.constant 6 : index
    %95 = vector.load %arg6[%c0_43, %c6] : memref<8x9xf32, #tpu.memory_space<vmem>>, vector<8x1xf32>
    %c0_44 = arith.constant 0 : index
    %c7 = arith.constant 7 : index
    %96 = vector.load %arg6[%c0_44, %c7] : memref<8x9xf32, #tpu.memory_space<vmem>>, vector<8x1xf32>
    %cst_45 = arith.constant 0.000000e+00 : f32
    %97 = vector.broadcast %cst_45 : f32 to vector<8x16xf32>
    %c0_46 = arith.constant 0 : index
    %c0_47 = arith.constant 0 : index
    %98 = vector.load %arg9[%c0_46, %c0_47] : memref<8x320xf32, #tpu.memory_space<vmem>>, vector<8x16xf32>
    tpu.vector_store %arg9[%c0_46, %c0_47], %97 {strides = array<i32>} : memref<8x320xf32, #tpu.memory_space<vmem>>, vector<8x16xf32>,
    %c0_48 = arith.constant 0 : index
    %c304_49 = arith.constant 304 : index
    %99 = vector.load %arg9[%c0_48, %c304_49] : memref<8x320xf32, #tpu.memory_space<vmem>>, vector<8x16xf32>
    tpu.vector_store %arg9[%c0_48, %c304_49], %97 {strides = array<i32>} : memref<8x320xf32, #tpu.memory_space<vmem>>, vector<8x16xf32>,
    %100 = vector.extract_strided_slice %91 {offsets = [0, 16], sizes = [8, 16], strides = [1, 1]} : vector<8x256xf32> to vector<8x16xf32>
    %c0_50 = arith.constant 0 : index
    %c16_51 = arith.constant 16 : index
    %101 = vector.load %arg9[%c0_50, %c16_51] : memref<8x320xf32, #tpu.memory_space<vmem>>, vector<8x16xf32>
    tpu.vector_store %arg9[%c0_50, %c16_51], %100 {strides = array<i32>} : memref<8x320xf32, #tpu.memory_space<vmem>>, vector<8x16xf32>,
    %c0_52 = arith.constant 0 : index
    %c32_53 = arith.constant 32 : index
    %102 = vector.load %arg9[%c0_52, %c32_53] : memref<8x320xf32, #tpu.memory_space<vmem>>, vector<8x256xf32>
    tpu.vector_store %arg9[%c0_52, %c32_53], %91 {strides = array<i32>} : memref<8x320xf32, #tpu.memory_space<vmem>>, vector<8x256xf32>,
    %103 = vector.extract_strided_slice %91 {offsets = [0, 224], sizes = [8, 16], strides = [1, 1]} : vector<8x256xf32> to vector<8x16xf32>
    %c0_54 = arith.constant 0 : index
    %c288_55 = arith.constant 288 : index
    %104 = vector.load %arg9[%c0_54, %c288_55] : memref<8x320xf32, #tpu.memory_space<vmem>>, vector<8x16xf32>
    tpu.vector_store %arg9[%c0_54, %c288_55], %103 {strides = array<i32>} : memref<8x320xf32, #tpu.memory_space<vmem>>, vector<8x16xf32>,
    %c0_56 = arith.constant 0 : index
    %c15_57 = arith.constant 15 : index
    %105 = vector.load %arg9[%c0_56, %c15_57] : memref<8x320xf32, #tpu.memory_space<vmem>>, vector<8x256xf32>
    %c0_58 = arith.constant 0 : index
    %c16_59 = arith.constant 16 : index
    %106 = vector.load %arg9[%c0_58, %c16_59] : memref<8x320xf32, #tpu.memory_space<vmem>>, vector<8x256xf32>
    %c0_60 = arith.constant 0 : index
    %c17_61 = arith.constant 17 : index
    %107 = vector.load %arg9[%c0_60, %c17_61] : memref<8x320xf32, #tpu.memory_space<vmem>>, vector<8x256xf32>
    %108 = vector.broadcast %0 : vector<1x256xf32> to vector<8x256xf32>
    %109 = arith.mulf %108, %107 : vector<8x256xf32>
    %110 = vector.broadcast %3 : vector<1x256xf32> to vector<8x256xf32>
    %111 = arith.mulf %110, %105 : vector<8x256xf32>
    %112 = arith.addf %109, %111 : vector<8x256xf32>
    %113 = vector.broadcast %1 : vector<1x256xf32> to vector<8x256xf32>
    %114 = arith.mulf %113, %105 : vector<8x256xf32>
    %115 = vector.broadcast %5 : vector<1x256xf32> to vector<8x256xf32>
    %116 = arith.mulf %115, %107 : vector<8x256xf32>
    %117 = arith.addf %114, %116 : vector<8x256xf32>
    %c0_62 = arith.constant 0 : index
    %c31_63 = arith.constant 31 : index
    %118 = vector.load %arg9[%c0_62, %c31_63] : memref<8x320xf32, #tpu.memory_space<vmem>>, vector<8x256xf32>
    %c0_64 = arith.constant 0 : index
    %c32_65 = arith.constant 32 : index
    %119 = vector.load %arg9[%c0_64, %c32_65] : memref<8x320xf32, #tpu.memory_space<vmem>>, vector<8x256xf32>
    %c0_66 = arith.constant 0 : index
    %c33_67 = arith.constant 33 : index
    %120 = vector.load %arg9[%c0_66, %c33_67] : memref<8x320xf32, #tpu.memory_space<vmem>>, vector<8x256xf32>
    %121 = vector.broadcast %0 : vector<1x256xf32> to vector<8x256xf32>
    %122 = arith.mulf %121, %120 : vector<8x256xf32>
    %123 = vector.broadcast %3 : vector<1x256xf32> to vector<8x256xf32>
    %124 = arith.mulf %123, %118 : vector<8x256xf32>
    %125 = arith.addf %122, %124 : vector<8x256xf32>
    %126 = vector.broadcast %1 : vector<1x256xf32> to vector<8x256xf32>
    %127 = arith.mulf %126, %118 : vector<8x256xf32>
    %128 = vector.broadcast %5 : vector<1x256xf32> to vector<8x256xf32>
    %129 = arith.mulf %128, %120 : vector<8x256xf32>
    %130 = arith.addf %127, %129 : vector<8x256xf32>
    %c0_68 = arith.constant 0 : index
    %c47_69 = arith.constant 47 : index
    %131 = vector.load %arg9[%c0_68, %c47_69] : memref<8x320xf32, #tpu.memory_space<vmem>>, vector<8x256xf32>
    %c0_70 = arith.constant 0 : index
    %c48_71 = arith.constant 48 : index
    %132 = vector.load %arg9[%c0_70, %c48_71] : memref<8x320xf32, #tpu.memory_space<vmem>>, vector<8x256xf32>
    %c0_72 = arith.constant 0 : index
    %c49_73 = arith.constant 49 : index
    %133 = vector.load %arg9[%c0_72, %c49_73] : memref<8x320xf32, #tpu.memory_space<vmem>>, vector<8x256xf32>
    %134 = vector.broadcast %0 : vector<1x256xf32> to vector<8x256xf32>
    %135 = arith.mulf %134, %133 : vector<8x256xf32>
    %136 = vector.broadcast %3 : vector<1x256xf32> to vector<8x256xf32>
    %137 = arith.mulf %136, %131 : vector<8x256xf32>
    %138 = arith.addf %135, %137 : vector<8x256xf32>
    %139 = vector.broadcast %1 : vector<1x256xf32> to vector<8x256xf32>
    %140 = arith.mulf %139, %131 : vector<8x256xf32>
    %141 = vector.broadcast %5 : vector<1x256xf32> to vector<8x256xf32>
    %142 = arith.mulf %141, %133 : vector<8x256xf32>
    %143 = arith.addf %140, %142 : vector<8x256xf32>
    %144 = tpu.concatenate %112, %106, %117, %125, %119, %130, %138, %132, %143 in 0 : vector<8x256xf32>, vector<8x256xf32>, vector<8x256xf32>, vector<8x256xf32>, vector<8x256xf32>, vector<8x256xf32>, vector<8x256xf32>, vector<8x256xf32>, vector<8x256xf32> -> vector<72x256xf32>
    %cst_74 = arith.constant dense<0.000000e+00> : vector<8x256xf32>
    %145 = tpu.matmul %92, %144, %cst_74 {dimension_numbers = #tpu.dot_dimension_numbers<[1], [0], [0], [1], [0, 0, 1, 1], [], []>} : vector<8x72xf32>, vector<72x256xf32>, vector<8x256xf32> -> vector<8x256xf32>
    %146 = vector.broadcast %93 : vector<8x1xf32> to vector<8x256xf32>
    %147 = arith.addf %145, %146 : vector<8x256xf32>
    %148 = vector.shape_cast %147 : vector<8x256xf32> to vector<1x8x256xf32>
    %cst_75 = arith.constant dense<0.000000e+00> : vector<1xf32>
    %149 = vector.multi_reduction <add>, %148, %cst_75 [1, 2] : vector<1x8x256xf32> to vector<1xf32>
    %150 = vector.shape_cast %149 : vector<1xf32> to vector<1x1x1xf32>
    %151 = vector.extract %150[0, 0, 0] : f32 from vector<1x1x1xf32>
    %cst_76 = arith.constant 2.048000e+03 : f32
    %152 = arith.divf %151, %cst_76 : f32
    %153 = arith.mulf %147, %147 : vector<8x256xf32>
    %154 = vector.shape_cast %153 : vector<8x256xf32> to vector<1x8x256xf32>
    %cst_77 = arith.constant dense<0.000000e+00> : vector<1xf32>
    %155 = vector.multi_reduction <add>, %154, %cst_77 [1, 2] : vector<1x8x256xf32> to vector<1xf32>
    %156 = vector.shape_cast %155 : vector<1xf32> to vector<1x1x1xf32>
    %157 = vector.extract %156[0, 0, 0] : f32 from vector<1x1x1xf32>
    %cst_78 = arith.constant 2.048000e+03 : f32
    %158 = arith.divf %157, %cst_78 : f32
    %159 = arith.mulf %152, %152 : f32
    %160 = arith.subf %158, %159 : f32
    %161 = vector.broadcast %152 : f32 to vector<8x256xf32>
    %162 = arith.subf %147, %161 : vector<8x256xf32>
    %cst_79 = arith.constant 9.99999974E-6 : f32
    %163 = arith.addf %160, %cst_79 : f32
    %164 = math.rsqrt %163 : f32
    %165 = vector.broadcast %164 : f32 to vector<8x256xf32>
    %166 = arith.mulf %162, %165 : vector<8x256xf32>
    %167 = vector.broadcast %94 : vector<8x1xf32> to vector<8x256xf32>
    %168 = arith.mulf %166, %167 : vector<8x256xf32>
    %169 = vector.broadcast %95 : vector<8x1xf32> to vector<8x256xf32>
    %170 = arith.addf %168, %169 : vector<8x256xf32>
    %cst_80 = arith.constant 0.000000e+00 : f32
    %171 = vector.broadcast %cst_80 : f32 to vector<8x256xf32>
    %172 = arith.cmpf oge, %170, %171 : vector<8x256xf32>
    %173 = vector.broadcast %96 : vector<8x1xf32> to vector<8x256xf32>
    %174 = arith.mulf %173, %170 : vector<8x256xf32>
    %175 = arith.select %172, %170, %174 : vector<8x256xi1>, vector<8x256xf32>
    %c0_81 = arith.constant 0 : index
    %c0_82 = arith.constant 0 : index
    %176 = vector.load %arg10[%c0_81, %c0_82] : memref<8x288xf32, #tpu.memory_space<vmem>>, vector<8x256xf32>
    tpu.vector_store %arg10[%c0_81, %c0_82], %175 {strides = array<i32>} : memref<8x288xf32, #tpu.memory_space<vmem>>, vector<8x256xf32>,
    %cst_83 = arith.constant 0.000000e+00 : f32
    %177 = vector.broadcast %cst_83 : f32 to vector<8x32xf32>
    %c0_84 = arith.constant 0 : index
    %c256 = arith.constant 256 : index
    %178 = vector.load %arg10[%c0_84, %c256] : memref<8x288xf32, #tpu.memory_space<vmem>>, vector<8x32xf32>
    tpu.vector_store %arg10[%c0_84, %c256], %177 {strides = array<i32>} : memref<8x288xf32, #tpu.memory_space<vmem>>, vector<8x32xf32>,
    %c0_85 = arith.constant 0 : index
    %c1_86 = arith.constant 1 : index
    %179 = vector.load %arg10[%c0_85, %c1_86] : memref<8x288xf32, #tpu.memory_space<vmem>>, vector<8x256xf32>
    %180 = vector.broadcast %5 : vector<1x256xf32> to vector<8x256xf32>
    %181 = arith.mulf %180, %179 : vector<8x256xf32>
    %c0_87 = arith.constant 0 : index
    %c16_88 = arith.constant 16 : index
    %182 = vector.load %arg10[%c0_87, %c16_88] : memref<8x288xf32, #tpu.memory_space<vmem>>, vector<8x256xf32>
    %c0_89 = arith.constant 0 : index
    %c17_90 = arith.constant 17 : index
    %183 = vector.load %arg10[%c0_89, %c17_90] : memref<8x288xf32, #tpu.memory_space<vmem>>, vector<8x256xf32>
    %184 = vector.broadcast %5 : vector<1x256xf32> to vector<8x256xf32>
    %185 = arith.mulf %184, %183 : vector<8x256xf32>
    %186 = tpu.concatenate %175, %181, %182, %185 in 0 : vector<8x256xf32>, vector<8x256xf32>, vector<8x256xf32>, vector<8x256xf32> -> vector<32x256xf32>
    %c0_91 = arith.constant 0 : index
    %c0_92 = arith.constant 0 : index
    %187 = vector.load %arg5[%c0_91, %c0_92] : memref<32x32xf32, #tpu.memory_space<vmem>>, vector<32x32xf32>
    %cst_93 = arith.constant dense<0.000000e+00> : vector<32x256xf32>
    %188 = tpu.matmul %187, %186, %cst_93 {dimension_numbers = #tpu.dot_dimension_numbers<[1], [0], [0], [1], [0, 0, 1, 1], [], []>} : vector<32x32xf32>, vector<32x256xf32>, vector<32x256xf32> -> vector<32x256xf32>
    %c0_94 = arith.constant 0 : index
    %c8 = arith.constant 8 : index
    %189 = vector.load %arg6[%c0_94, %c8] : memref<8x9xf32, #tpu.memory_space<vmem>>, vector<8x1xf32>
    %190 = vector.extract_strided_slice %188 {offsets = [0, 0], sizes = [8, 256], strides = [1, 1]} : vector<32x256xf32> to vector<8x256xf32>
    %191 = vector.broadcast %189 : vector<8x1xf32> to vector<8x256xf32>
    %192 = arith.addf %190, %191 : vector<8x256xf32>
    %c0_95 = arith.constant 0 : index
    %c0_96 = arith.constant 0 : index
    %c0_97 = arith.constant 0 : index
    %c0_98 = arith.constant 0 : index
    %193 = vector.load %arg7[%c0_95, %c0_96, %c0_97, %c0_98] : memref<1x4x8x256xf32, #tpu.memory_space<vmem>>, vector<1x1x8x256xf32>
    %194 = vector.shape_cast %193 : vector<1x1x8x256xf32> to vector<8x256xf32>
    %195 = vector.shape_cast %192 : vector<8x256xf32> to vector<1x1x8x256xf32>
    tpu.vector_store %arg7[%c0_95, %c0_96, %c0_97, %c0_98], %195 {strides = array<i32>} : memref<1x4x8x256xf32, #tpu.memory_space<vmem>>, vector<1x1x8x256xf32>,
    %196 = vector.extract_strided_slice %188 {offsets = [8, 0], sizes = [8, 256], strides = [1, 1]} : vector<32x256xf32> to vector<8x256xf32>
    %197 = vector.broadcast %189 : vector<8x1xf32> to vector<8x256xf32>
    %198 = arith.addf %196, %197 : vector<8x256xf32>
    %c0_99 = arith.constant 0 : index
    %c1_100 = arith.constant 1 : index
    %c0_101 = arith.constant 0 : index
    %c0_102 = arith.constant 0 : index
    %199 = vector.load %arg7[%c0_99, %c1_100, %c0_101, %c0_102] : memref<1x4x8x256xf32, #tpu.memory_space<vmem>>, vector<1x1x8x256xf32>
    %200 = vector.shape_cast %199 : vector<1x1x8x256xf32> to vector<8x256xf32>
    %201 = vector.shape_cast %198 : vector<8x256xf32> to vector<1x1x8x256xf32>
    tpu.vector_store %arg7[%c0_99, %c1_100, %c0_101, %c0_102], %201 {strides = array<i32>} : memref<1x4x8x256xf32, #tpu.memory_space<vmem>>, vector<1x1x8x256xf32>,
    %202 = vector.extract_strided_slice %188 {offsets = [16, 0], sizes = [8, 256], strides = [1, 1]} : vector<32x256xf32> to vector<8x256xf32>
    %203 = vector.broadcast %189 : vector<8x1xf32> to vector<8x256xf32>
    %204 = arith.addf %202, %203 : vector<8x256xf32>
    %c0_103 = arith.constant 0 : index
    %c2_104 = arith.constant 2 : index
    %c0_105 = arith.constant 0 : index
    %c0_106 = arith.constant 0 : index
    %205 = vector.load %arg7[%c0_103, %c2_104, %c0_105, %c0_106] : memref<1x4x8x256xf32, #tpu.memory_space<vmem>>, vector<1x1x8x256xf32>
    %206 = vector.shape_cast %205 : vector<1x1x8x256xf32> to vector<8x256xf32>
    %207 = vector.shape_cast %204 : vector<8x256xf32> to vector<1x1x8x256xf32>
    tpu.vector_store %arg7[%c0_103, %c2_104, %c0_105, %c0_106], %207 {strides = array<i32>} : memref<1x4x8x256xf32, #tpu.memory_space<vmem>>, vector<1x1x8x256xf32>,
    %208 = vector.extract_strided_slice %188 {offsets = [24, 0], sizes = [8, 256], strides = [1, 1]} : vector<32x256xf32> to vector<8x256xf32>
    %209 = vector.broadcast %189 : vector<8x1xf32> to vector<8x256xf32>
    %210 = arith.addf %208, %209 : vector<8x256xf32>
    %c0_107 = arith.constant 0 : index
    %c3_108 = arith.constant 3 : index
    %c0_109 = arith.constant 0 : index
    %c0_110 = arith.constant 0 : index
    %211 = vector.load %arg7[%c0_107, %c3_108, %c0_109, %c0_110] : memref<1x4x8x256xf32, #tpu.memory_space<vmem>>, vector<1x1x8x256xf32>
    %212 = vector.shape_cast %211 : vector<1x1x8x256xf32> to vector<8x256xf32>
    %213 = vector.shape_cast %210 : vector<8x256xf32> to vector<1x1x8x256xf32>
    tpu.vector_store %arg7[%c0_107, %c3_108, %c0_109, %c0_110], %213 {strides = array<i32>} : memref<1x4x8x256xf32, #tpu.memory_space<vmem>>, vector<1x1x8x256xf32>,
    return
  }
  func.func @transform_0(%arg0: i32) -> (i32, i32, i32) {
    %c0_i32 = arith.constant 0 : i32
    %c0_i32_0 = arith.constant 0 : i32
    %c0_i32_1 = arith.constant 0 : i32
    return %arg0, %c0_i32, %c0_i32_0 : i32, i32, i32
  }
  func.func @transform_1(%arg0: i32) -> (i32, i32) {
    %c0_i32 = arith.constant 0 : i32
    %c0_i32_0 = arith.constant 0 : i32
    %c0_i32_1 = arith.constant 0 : i32
    return %c0_i32, %c0_i32_0 : i32, i32
  }
  func.func @transform_2(%arg0: i32) -> (i32, i32) {
    %c0_i32 = arith.constant 0 : i32
    %c0_i32_0 = arith.constant 0 : i32
    %c0_i32_1 = arith.constant 0 : i32
    return %c0_i32, %c0_i32_0 : i32, i32
  }
  func.func @transform_3(%arg0: i32) -> (i32, i32) {
    %c0_i32 = arith.constant 0 : i32
    %c0_i32_0 = arith.constant 0 : i32
    %c0_i32_1 = arith.constant 0 : i32
    return %c0_i32, %c0_i32_0 : i32, i32
  }
  func.func @transform_4(%arg0: i32) -> (i32, i32) {
    %c0_i32 = arith.constant 0 : i32
    %c0_i32_0 = arith.constant 0 : i32
    %c0_i32_1 = arith.constant 0 : i32
    return %c0_i32, %c0_i32_0 : i32, i32
  }
  func.func @transform_5(%arg0: i32) -> (i32, i32) {
    %c0_i32 = arith.constant 0 : i32
    %c0_i32_0 = arith.constant 0 : i32
    %c0_i32_1 = arith.constant 0 : i32
    return %c0_i32, %c0_i32_0 : i32, i32
  }
  func.func @transform_6(%arg0: i32) -> (i32, i32, i32, i32) {
    %c0_i32 = arith.constant 0 : i32
    %c0_i32_0 = arith.constant 0 : i32
    %c0_i32_1 = arith.constant 0 : i32
    %c0_i32_2 = arith.constant 0 : i32
    return %arg0, %c0_i32, %c0_i32_0, %c0_i32_1 : i32, i32, i32, i32
  }
}

</mosaic_0001>

<llo_original>
// kernel: upblock_forward.1
$region0: #{upblock_forward.1}
  #allocation0 [shape = 'u32[]', space=smem, size = 0x4, offset = 0x4, fixed_abs, tag = 'smem constant byte address 0x4 - core index']
  #allocation1 [shape = 'u32[144,128]{1,0:T(1,128)}', space=vmem, size = 0x12000, scoped, tag = 'internal scratch']
  #allocation2 [shape = 'f32[4,320]{1,0:T(4,128)}', space=vmem, size = 0x1800, scoped, tag = 'scratch operand']
  #allocation3 [shape = 'f32[8,320]{1,0:T(8,128)}', space=vmem, size = 0x3000, scoped, tag = 'scratch operand']
  #allocation4 [shape = 'f32[8,288]{1,0:T(8,128)}', space=vmem, size = 0x3000, scoped, tag = 'scratch operand']
  %s0 = inlined_call_operand.vmem [shape: f32[2,4,256], index: 0, kind: input, shape index: {}]
  %s1 = inlined_call_operand.vmem [shape: f32[2,256], index: 1, kind: input, shape index: {}]
  %s2 = inlined_call_operand.vmem [shape: f32[8,36], index: 2, kind: input, shape index: {}]
  %s3 = inlined_call_operand.vmem [shape: f32[8,72], index: 3, kind: input, shape index: {}]
  %s4 = inlined_call_operand.vmem [shape: f32[32,32], index: 4, kind: input, shape index: {}]
  %s5 = inlined_call_operand.vmem [shape: f32[8,9], index: 5, kind: input, shape index: {}]
  %s6 = inlined_call_operand.vmem [shape: f32[2,4,8,256], index: 6, kind: output, shape index: {}]
  %s7 = sld [smem:[#allocation0]]
  $region57: #{upblock_forward.1} parent=0
    _
  %s9 = ssub.s32 1, %s7
  %s10 = scalar_select 0, %s9, %s7
  loop: start=0, step=1, limit=4
  $region2: #{upblock_forward.1} parent=0 // loop_pre_header
    _
  $region3: #{upblock_forward.1} parent=0 // loop_header
    %s12 = sphi 0, %s16
    %p13 = scmp.ge.s32.totalorder %s12, 4
    %s22 = sphi 0, %s24
    %s25 = sphi 0, %s22
    %s26 = sphi 0, %s25
    %s42 = sphi 0, %s26
    %s46 = sphi 0, %s46
    %s48 = sphi 0, %s46
    %s49 = sphi 0, %s48
    %s63 = sphi 0, %s49
    %s67 = sphi 0, %s67
    %s69 = sphi 0, %s67
    %s70 = sphi 0, %s69
    %s84 = sphi 0, %s70
    %s88 = sphi 0, %s88
    %s90 = sphi 0, %s88
    %s91 = sphi 0, %s90
    %s105 = sphi 0, %s91
    %s109 = sphi 0, %s109
    %s111 = sphi 0, %s109
    %s112 = sphi 0, %s111
    %s126 = sphi 0, %s112
    %s130 = sphi 0, %s130
    %s132 = sphi 0, %s130
    %s133 = sphi 0, %s132
    %s147 = sphi 0, %s133
    %s153 = sphi 0, %s155
    %s156 = sphi 0, %s153
    %s157 = sphi 0, %s156
    %s173 = sphi 0, %s157
  $region4: #{upblock_forward.1} parent=0 // loop_header_branch
    %15 = sbr.rel (%p13) target = $region8
  $region5: #{upblock_forward.1} parent=0 // loop_body
    %s17 = ssub.s32 %s12, 1
    %s18 = ssub.s32 %s12, 2
    %s19 = sadd.s32 %s12, 1
    %s20 = ssub.s32 %s12, %s19
    %p21 = scmp.eq.s32.totalorder %s20, 0
    %s23 = sadd.s32 %s22, 1
    %s24 = scalar_select %p21, %s22, %s23
    %p27 = pneg %p21
    %p28 = scmp.eq.s32.totalorder %s12, 1
    %p29 = por %p27, %p28
    %p30 = scmp.ne.s32.totalorder %s22, %s25
    %p31 = scmp.eq.s32.totalorder %s12, 0
    %p32 = por %p30, %p31
    %p33 = scmp.ne.s32.totalorder %s22, %s25
    %p34 = scmp.eq.s32.totalorder %s17, 1
    %p35 = por %p33, %p34
    %p36 = scmp.ne.s32.totalorder %s25, %s26
    %p37 = scmp.eq.s32.totalorder %s17, 0
    %p38 = por %p36, %p37
    %p39 = scmp.ne.s32.totalorder %s25, %s26
    %p40 = scmp.eq.s32.totalorder %s18, 1
    %p41 = por %p39, %p40
    %p43 = scmp.ne.s32.totalorder %s26, %s42
    %p44 = scmp.eq.s32.totalorder %s18, 0
    %p45 = por %p43, %p44
    %s47 = sadd.s32 %s46, 1
    %p50 = scmp.eq.s32.totalorder %s12, 1
    %p51 = scmp.ne.s32.totalorder %s46, %s48
    %p52 = scmp.eq.s32.totalorder %s12, 0
    %p53 = por %p51, %p52
    %p54 = scmp.ne.s32.totalorder %s46, %s48
    %p55 = scmp.eq.s32.totalorder %s17, 1
    %p56 = por %p54, %p55
    %p57 = scmp.ne.s32.totalorder %s48, %s49
    %p58 = scmp.eq.s32.totalorder %s17, 0
    %p59 = por %p57, %p58
    %p60 = scmp.ne.s32.totalorder %s48, %s49
    %p61 = scmp.eq.s32.totalorder %s18, 1
    %p62 = por %p60, %p61
    %p64 = scmp.ne.s32.totalorder %s49, %s63
    %p65 = scmp.eq.s32.totalorder %s18, 0
    %p66 = por %p64, %p65
    %s68 = sadd.s32 %s67, 1
    %p71 = scmp.eq.s32.totalorder %s12, 1
    %p72 = scmp.ne.s32.totalorder %s67, %s69
    %p73 = scmp.eq.s32.totalorder %s12, 0
    %p74 = por %p72, %p73
    %p75 = scmp.ne.s32.totalorder %s67, %s69
    %p76 = scmp.eq.s32.totalorder %s17, 1
    %p77 = por %p75, %p76
    %p78 = scmp.ne.s32.totalorder %s69, %s70
    %p79 = scmp.eq.s32.totalorder %s17, 0
    %p80 = por %p78, %p79
    %p81 = scmp.ne.s32.totalorder %s69, %s70
    %p82 = scmp.eq.s32.totalorder %s18, 1
    %p83 = por %p81, %p82
    %p85 = scmp.ne.s32.totalorder %s70, %s84
    %p86 = scmp.eq.s32.totalorder %s18, 0
    %p87 = por %p85, %p86
    %s89 = sadd.s32 %s88, 1
    %p92 = scmp.eq.s32.totalorder %s12, 1
    %p93 = scmp.ne.s32.totalorder %s88, %s90
    %p94 = scmp.eq.s32.totalorder %s12, 0
    %p95 = por %p93, %p94
    %p96 = scmp.ne.s32.totalorder %s88, %s90
    %p97 = scmp.eq.s32.totalorder %s17, 1
    %p98 = por %p96, %p97
    %p99 = scmp.ne.s32.totalorder %s90, %s91
    %p100 = scmp.eq.s32.totalorder %s17, 0
    %p101 = por %p99, %p100
    %p102 = scmp.ne.s32.totalorder %s90, %s91
    %p103 = scmp.eq.s32.totalorder %s18, 1
    %p104 = por %p102, %p103
    %p106 = scmp.ne.s32.totalorder %s91, %s105
    %p107 = scmp.eq.s32.totalorder %s18, 0
    %p108 = por %p106, %p107
    %s110 = sadd.s32 %s109, 1
    %p113 = scmp.eq.s32.totalorder %s12, 1
    %p114 = scmp.ne.s32.totalorder %s109, %s111
    %p115 = scmp.eq.s32.totalorder %s12, 0
    %p116 = por %p114, %p115
    %p117 = scmp.ne.s32.totalorder %s109, %s111
    %p118 = scmp.eq.s32.totalorder %s17, 1
    %p119 = por %p117, %p118
    %p120 = scmp.ne.s32.totalorder %s111, %s112
    %p121 = scmp.eq.s32.totalorder %s17, 0
    %p122 = por %p120, %p121
    %p123 = scmp.ne.s32.totalorder %s111, %s112
    %p124 = scmp.eq.s32.totalorder %s18, 1
    %p125 = por %p123, %p124
    %p127 = scmp.ne.s32.totalorder %s112, %s126
    %p128 = scmp.eq.s32.totalorder %s18, 0
    %p129 = por %p127, %p128
    %s131 = sadd.s32 %s130, 1
    %p134 = scmp.eq.s32.totalorder %s12, 1
    %p135 = scmp.ne.s32.totalorder %s130, %s132
    %p136 = scmp.eq.s32.totalorder %s12, 0
    %p137 = por %p135, %p136
    %p138 = scmp.ne.s32.totalorder %s130, %s132
    %p139 = scmp.eq.s32.totalorder %s17, 1
    %p140 = por %p138, %p139
    %p141 = scmp.ne.s32.totalorder %s132, %s133
    %p142 = scmp.eq.s32.totalorder %s17, 0
    %p143 = por %p141, %p142
    %p144 = scmp.ne.s32.totalorder %s132, %s133
    %p145 = scmp.eq.s32.totalorder %s18, 1
    %p146 = por %p144, %p145
    %p148 = scmp.ne.s32.totalorder %s133, %s147
    %p149 = scmp.eq.s32.totalorder %s18, 0
    %p150 = por %p148, %p149
    %s151 = ssub.s32 %s12, %s19
    %p152 = scmp.eq.s32.totalorder %s151, 0
    %s154 = sadd.s32 %s153, 1
    %s155 = scalar_select %p152, %s153, %s154
    %p158 = pneg %p152
    %p159 = scmp.eq.s32.totalorder %s12, 1
    %p160 = por %p158, %p159
    %p161 = scmp.ne.s32.totalorder %s153, %s156
    %p162 = scmp.eq.s32.totalorder %s12, 0
    %p163 = por %p161, %p162
    %p164 = scmp.ne.s32.totalorder %s153, %s156
    %p165 = scmp.eq.s32.totalorder %s17, 1
    %p166 = por %p164, %p165
    %p167 = scmp.ne.s32.totalorder %s156, %s157
    %p168 = scmp.eq.s32.totalorder %s17, 0
    %p169 = por %p167, %p168
    %p170 = scmp.ne.s32.totalorder %s156, %s157
    %p171 = scmp.eq.s32.totalorder %s18, 1
    %p172 = por %p170, %p171
    %p174 = scmp.ne.s32.totalorder %s157, %s173
    %p175 = scmp.eq.s32.totalorder %s18, 0
    %p176 = por %p174, %p175
    %p177 = scmp.le.s32.totalorder 1, %s12
    %p178 = scmp.lt.s32.totalorder %s12, 3
    %p179 = pnand %p177, %p178
    %p180 = pneg %p179
    // Predicated region
    $region9: #{upblock_forward.1} parent=5 // pred_check
      _
    $region10: #{upblock_forward.1} parent=5 // pred_check_branch
      %182 = sbr.rel (%p179) target = $region12
    $region11: #{upblock_forward.1} parent=5 // pred_region
      %s183 = ssub.s32 %s12, 1
      // Predicated region
      $region13: #{upblock_forward.1} parent=11 // pred_check
        %p184 = pneg %p59
      $region14: #{upblock_forward.1} parent=11 // pred_check_branch
        %186 = sbr.rel (%p184) target = $region16
      $region15: #{upblock_forward.1} parent=11 // pred_region
        _
      $region16: #{upblock_forward.1} parent=11 // pred_fallthru
        _
      // Predicated region
      $region17: #{upblock_forward.1} parent=11 // pred_check
        %p187 = pneg %p80
      $region18: #{upblock_forward.1} parent=11 // pred_check_branch
        %189 = sbr.rel (%p187) target = $region20
      $region19: #{upblock_forward.1} parent=11 // pred_region
        _
      $region20: #{upblock_forward.1} parent=11 // pred_fallthru
        _
      // Predicated region
      $region21: #{upblock_forward.1} parent=11 // pred_check
        %p190 = pneg %p101
      $region22: #{upblock_forward.1} parent=11 // pred_check_branch
        %192 = sbr.rel (%p190) target = $region24
      $region23: #{upblock_forward.1} parent=11 // pred_region
        _
      $region24: #{upblock_forward.1} parent=11 // pred_fallthru
        _
      // Predicated region
      $region25: #{upblock_forward.1} parent=11 // pred_check
        %p193 = pneg %p122
      $region26: #{upblock_forward.1} parent=11 // pred_check_branch
        %195 = sbr.rel (%p193) target = $region28
      $region27: #{upblock_forward.1} parent=11 // pred_region
        _
      $region28: #{upblock_forward.1} parent=11 // pred_fallthru
        _
      // Predicated region
      $region29: #{upblock_forward.1} parent=11 // pred_check
        %p196 = pneg %p143
      $region30: #{upblock_forward.1} parent=11 // pred_check_branch
        %198 = sbr.rel (%p196) target = $region32
      $region31: #{upblock_forward.1} parent=11 // pred_region
        _
      $region32: #{upblock_forward.1} parent=11 // pred_fallthru
        _
    $region12: #{upblock_forward.1} parent=5 // pred_fallthru
      _
    %p199 = scmp.lt.s32.totalorder %s12, 2
    // Predicated region
    $region33: #{upblock_forward.1} parent=5 // pred_check
      %p200 = pneg %p199
    $region34: #{upblock_forward.1} parent=5 // pred_check_branch
      %202 = sbr.rel (%p200) target = $region36
    $region35: #{upblock_forward.1} parent=5 // pred_region
      // Predicated region
      $region37: #{upblock_forward.1} parent=35 // pred_check
        %p203 = pneg %p32
      $region38: #{upblock_forward.1} parent=35 // pred_check_branch
        %205 = sbr.rel (%p203) target = $region40
      $region39: #{upblock_forward.1} parent=35 // pred_region
        %p206 = scmp.lt.s32.totalorder %s12, 1
        %s207 = scalar_select %p206, %s12, 1
        %s208 = smul.addr %s207, 2
        %s209 = smul.addr %s208, 4
        %s210 = scalar_lea.vmem %s0, %s209
      $region40: #{upblock_forward.1} parent=35 // pred_fallthru
        _
    $region36: #{upblock_forward.1} parent=5 // pred_fallthru
      _
    %p211 = scmp.le.s32.totalorder 1, %s12
    %p212 = scmp.lt.s32.totalorder %s12, 3
    %p213 = pnand %p211, %p212
    %p214 = pneg %p213
    // Predicated region
    $region41: #{upblock_forward.1} parent=5 // pred_check
      _
    $region42: #{upblock_forward.1} parent=5 // pred_check_branch
      %216 = sbr.rel (%p213) target = $region44
    $region43: #{upblock_forward.1} parent=5 // pred_region
      %s217 = ssub.s32 %s12, 1
      %p218 = scmp.lt.s32.totalorder %s17, 1
      %s219 = scalar_select %p218, %s17, 1
      %s220 = smul.addr %s219, 2
      %s221 = smul.addr %s220, 4
      %s222 = scalar_lea.vmem %s0, %s221
      %p223 = pneg %p38
      %p224 = pneg %p35
      %p225 = pneg %p59
      %p226 = pneg %p56
      %p227 = pneg %p80
      %p228 = pneg %p77
      %p229 = pneg %p101
      %p230 = pneg %p98
      %p231 = pneg %p122
      %p232 = pneg %p119
      %p233 = pneg %p143
      %p234 = pneg %p140
      %p235 = pneg %p169
      %p236 = pneg %p166
      %p237 = scmp.lt.s32.totalorder %s17, 1
      %s238 = scalar_select %p237, %s17, 1
      %s239 = smul.addr %s238, 8
      %s240 = smul.addr %s239, 8
      %s241 = scalar_lea.vmem %s6, %s240
      %p242 = scmp.lt.s32.totalorder %s17, 1
      %s243 = scalar_select %p242, %s17, 1
      %s244 = smul.addr %s243, 2
      %s245 = smul.addr %s244, 4
      %s246 = scalar_lea.vmem %s0, %s245
      %p247 = scmp.lt.s32.totalorder %s17, 1
      %s248 = scalar_select %p247, %s17, 1
      %s249 = smul.addr %s248, 8
      %s250 = smul.addr %s249, 8
      %s251 = scalar_lea.vmem %s6, %s250
      %v252 = vld [vmem:[%s1] ss:$2 sm:$0x3]
      %s253 = scalar_lea.vmem %s1, 1
      %v254 = vld [vmem:[%s253] ss:$2 sm:$0x3]
      %v255 = vsub.f32 1.0, %v252
      %v256 = vsub.f32 1.0, %v254
      %v257 = vld [vmem:[%s246] sm:$0xff]
      %v258 = vld [vmem:[%s2] sm:$0xff]
      %v259 = vld [vmem:[%s5] sm:$0xff]
      %vm260 = vcmask 125952
      %261 = vst.msk [vmem:[#allocation2] sm:$0xf] %vm260, 0.0
      %vm262 = vcmask 519552
      %263 = vst.msk [vmem:[#allocation2 + $0x8] sm:$0xf] %vm262, 0.0
      %vm264 = vcmask 257152
      %265 = vst.msk [vmem:[#allocation2] sm:$0xf] %vm264, %v257
      %267 = vrot.lane.b32.xlu0 %v257, 32
      %v268 = vpop.permute.xlu0 %267
      %v269 = vrot.slane %v268, 4
      %vm270 = vcmask 261120
      %v271 = vsel %vm270, %v269, %v268
      %vm274 = vcmask 1043712
      %vm275 = vcmask 1047556
      %vm276 = vmor %vm275, %vm274
      %277 = vst.msk [vmem:[#allocation2] sm:$0xff] %vm276, %v271
      %vm278 = vcmask 257024
      %279 = vst.msk [vmem:[#allocation2 + $0x8] sm:$0xf] %vm278, %v269
      %280 = vrot.lane.b32.xlu0 %v257, 64
      %v281 = vpop.permute.xlu0 %280
      %v282 = vrot.slane %v281, 4
      %vm284 = vcmask 388352
      %285 = vst.msk [vmem:[#allocation2 + $0x8] sm:$0xf] %vm284, %v282
      %v286 = vld [vmem:[#allocation2] sm:$0xff]
      %v287 = vld [vmem:[#allocation2 + $0x8] sm:$0xf]
      %v289 = vlaneseq
      %v290 = vshrl.u32 %v289, 7
      %v291 = vsub.s32 0, %v290
      %v292 = vrot.slane %v252, %v291
      %v293 = vlaneseq
      %v294 = vshrl.u32 %v293, 7
      %v295 = vsub.s32 1, %v294
      %v296 = vrot.slane %v252, %v295
      %v301 = vcombine.high %v286, %v286
      %302 = vrot.lane.b32.xlu0 %v286, 111
      %v303 = vpop.permute.xlu0 %302
      %304 = vrot.lane.b32.xlu0 %v301, 111
      %v305 = vpop.permute.xlu0 %304
      %306 = vrot.lane.b32.xlu0 %v287, 111
      %v307 = vpop.permute.xlu0 %306
      %vm308 = vcmask 908288
      %v309 = vsel %vm308, %v303, %v305
      %v310 = vsel %vm308, %v305, %v307
      %v313 = vmul.f32 %v292, %v309
      %v314 = vmul.f32 %v296, %v310
      %v316 = vlaneseq
      %v317 = vshrl.u32 %v316, 7
      %v318 = vsub.s32 0, %v317
      %v319 = vrot.slane %v255, %v318
      %v320 = vlaneseq
      %v321 = vshrl.u32 %v320, 7
      %v322 = vsub.s32 1, %v321
      %v323 = vrot.slane %v255, %v322
      %326 = vrot.lane.b32.xlu0 %v286, 113
      %v327 = vpop.permute.xlu0 %326
      %328 = vrot.lane.b32.xlu0 %v301, 113
      %v329 = vpop.permute.xlu0 %328
      %330 = vrot.lane.b32.xlu0 %v287, 113
      %v331 = vpop.permute.xlu0 %330
      %vm332 = vcmask 924672
      %v333 = vsel %vm332, %v327, %v329
      %v334 = vsel %vm332, %v329, %v331
      %v337 = vmul.f32 %v319, %v333
      %v338 = vmul.f32 %v323, %v334
      %v339 = vadd.f32 %v313, %v337
      %v340 = vadd.f32 %v314, %v338
      %v342 = vlaneseq
      %v343 = vshrl.u32 %v342, 7
      %v344 = vsub.s32 0, %v343
      %v345 = vrot.slane %v254, %v344
      %v346 = vlaneseq
      %v347 = vshrl.u32 %v346, 7
      %v348 = vsub.s32 1, %v347
      %v349 = vrot.slane %v254, %v348
      %v352 = vmul.f32 %v345, %v333
      %v353 = vmul.f32 %v349, %v334
      %v355 = vlaneseq
      %v356 = vshrl.u32 %v355, 7
      %v357 = vsub.s32 0, %v356
      %v358 = vrot.slane %v256, %v357
      %v359 = vlaneseq
      %v360 = vshrl.u32 %v359, 7
      %v361 = vsub.s32 1, %v360
      %v362 = vrot.slane %v256, %v361
      %v365 = vmul.f32 %v358, %v309
      %v366 = vmul.f32 %v362, %v310
      %v367 = vadd.f32 %v352, %v365
      %v368 = vadd.f32 %v353, %v366
      %369 = vrot.lane.b32.xlu0 %v286, 95
      %v370 = vpop.permute.xlu0 %369
      %371 = vrot.lane.b32.xlu0 %v301, 95
      %v372 = vpop.permute.xlu0 %371
      %373 = vrot.lane.b32.xlu0 %v287, 95
      %v374 = vpop.permute.xlu0 %373
      %vm375 = vcmask 777216
      %v376 = vsel %vm375, %v370, %v372
      %v377 = vsel %vm375, %v372, %v374
      %v380 = vmul.f32 %v292, %v376
      %v381 = vmul.f32 %v296, %v377
      %382 = vrot.lane.b32.xlu0 %v286, 97
      %v383 = vpop.permute.xlu0 %382
      %384 = vrot.lane.b32.xlu0 %v301, 97
      %v385 = vpop.permute.xlu0 %384
      %386 = vrot.lane.b32.xlu0 %v287, 97
      %v387 = vpop.permute.xlu0 %386
      %vm388 = vcmask 793600
      %v389 = vsel %vm388, %v383, %v385
      %v390 = vsel %vm388, %v385, %v387
      %v393 = vmul.f32 %v319, %v389
      %v394 = vmul.f32 %v323, %v390
      %v395 = vadd.f32 %v380, %v393
      %v396 = vadd.f32 %v381, %v394
      %v397 = vmul.f32 %v345, %v389
      %v398 = vmul.f32 %v349, %v390
      %v399 = vmul.f32 %v358, %v376
      %v400 = vmul.f32 %v362, %v377
      %v401 = vadd.f32 %v397, %v399
      %v402 = vadd.f32 %v398, %v400
      %403 = vrot.lane.b32.xlu0 %v286, 79
      %v404 = vpop.permute.xlu0 %403
      %405 = vrot.lane.b32.xlu0 %v301, 79
      %v406 = vpop.permute.xlu0 %405
      %407 = vrot.lane.b32.xlu0 %v287, 79
      %v408 = vpop.permute.xlu0 %407
      %vm409 = vcmask 646144
      %v410 = vsel %vm409, %v404, %v406
      %v411 = vsel %vm409, %v406, %v408
      %v414 = vmul.f32 %v292, %v410
      %v415 = vmul.f32 %v296, %v411
      %416 = vrot.lane.b32.xlu0 %v286, 81
      %v417 = vpop.permute.xlu0 %416
      %418 = vrot.lane.b32.xlu0 %v301, 81
      %v419 = vpop.permute.xlu0 %418
      %420 = vrot.lane.b32.xlu0 %v287, 81
      %v421 = vpop.permute.xlu0 %420
      %vm422 = vcmask 662528
      %v423 = vsel %vm422, %v417, %v419
      %v424 = vsel %vm422, %v419, %v421
      %v427 = vmul.f32 %v319, %v423
      %v428 = vmul.f32 %v323, %v424
      %v429 = vadd.f32 %v414, %v427
      %v430 = vadd.f32 %v415, %v428
      %v431 = vmul.f32 %v345, %v423
      %v432 = vmul.f32 %v349, %v424
      %v433 = vmul.f32 %v358, %v410
      %v434 = vmul.f32 %v362, %v411
      %v435 = vadd.f32 %v431, %v433
      %v436 = vadd.f32 %v432, %v434
      %v437 = vcombine.low %v286, %v286
      %v438 = vcombine.low %v287, %v287
      %439 = vrot.lane.b32.xlu0 %v437, 112
      %v440 = vpop.permute.xlu0 %439
      %441 = vrot.lane.b32.xlu0 %v286, 112
      %v442 = vpop.permute.xlu0 %441
      %443 = vrot.lane.b32.xlu0 %v438, 112
      %v444 = vpop.permute.xlu0 %443
      %vm445 = vcmask 916480
      %v446 = vsel %vm445, %v440, %v442
      %v447 = vsel %vm445, %v442, %v444
      %v452 = vrot.slane %v395, 4
      %v453 = vrot.slane %v396, 4
      %456 = vrot.lane.b32.xlu0 %v286, 96
      %v457 = vpop.permute.xlu0 %456
      %458 = vrot.lane.b32.xlu0 %v301, 96
      %v459 = vpop.permute.xlu0 %458
      %460 = vrot.lane.b32.xlu0 %v287, 96
      %v461 = vpop.permute.xlu0 %460
      %vm462 = vcmask 785408
      %v463 = vsel %vm462, %v457, %v459
      %v464 = vsel %vm462, %v459, %v461
      %v469 = vrot.slane %v401, 4
      %v470 = vrot.slane %v402, 4
      %473 = vrot.lane.b32.xlu0 %v437, 80
      %v474 = vpop.permute.xlu0 %473
      %475 = vrot.lane.b32.xlu0 %v286, 80
      %v476 = vpop.permute.xlu0 %475
      %477 = vrot.lane.b32.xlu0 %v438, 80
      %v478 = vpop.permute.xlu0 %477
      %vm479 = vcmask 654336
      %v480 = vsel %vm479, %v474, %v476
      %v481 = vsel %vm479, %v476, %v478
      %vm484 = vcmask 1043456
      %v485 = vsel %vm484, %v339, %v446
      %v486 = vsel %vm484, %v340, %v447
      %v487 = vsel %vm484, %v367, %v452
      %v488 = vsel %vm484, %v368, %v453
      %v489 = vsel %vm484, %v463, %v469
      %v490 = vsel %vm484, %v464, %v470
      %v491 = vsel %vm484, %v429, %v480
      %v492 = vsel %vm484, %v430, %v481
      %494 = vset.pattern.permute.xlu0 0
      %495 = vperm.xlu0 %494, %v259
      %v496 = vpop.permute.xlu0 %495
      %vm498 = vcmask 293888
      %v500 = vsel %vm498, %v258, 0
      %v503 = vsel %vm484, %v435, 0
      %v506 = vsel %vm484, %v436, 0
      %508 = vmatprep.subr.mxu0 %v486
      %509 = vmatpush1.msra.mxu0 %v485
      %510 = vmatprep.subr.mxu0 %v488
      %511 = vmatpush1.msra.mxu0 %v487
      %512 = vmatprep.subr.mxu0 %v490
      %513 = vmatpush1.msra.mxu0 %v489
      %514 = vmatprep.subr.mxu0 %v492
      %515 = vmatpush1.msra.mxu0 %v491
      %516 = vmatprep.subr.mxu0 %v506
      %517 = vmatpush1.msra.mxu0 %v503
      %518 = vmatprep.subr.mxu0 0.0
      %519 = vmatpush1.msra.mxu0 0.0
      %520 = vmatprep.subr.mxu0 0.0
      %521 = vmatpush1.msra.mxu0 0.0
      %522 = vmatprep.subr.mxu0 0.0
      %523 = vmatpush1.msra.mxu0 0.0
      %524 = vmatprep.subr.mxu0 0.0
      %525 = vmatpush1.msra.mxu0 0.0
      %526 = vmatprep.subr.mxu0 0.0
      %527 = vmatpush1.msra.mxu0 0.0
      %528 = vmatprep.subr.mxu0 0.0
      %529 = vmatpush1.msra.mxu0 0.0
      %530 = vmatprep.subr.mxu0 0.0
      %531 = vmatpush1.msra.mxu0 0.0
      %532 = vmatprep.subr.mxu0 0.0
      %533 = vmatpush1.msra.mxu0 0.0
      %534 = vmatprep.subr.mxu0 0.0
      %535 = vmatpush1.msra.mxu0 0.0
      %536 = vmatprep.subr.mxu0 0.0
      %537 = vmatpush1.msra.mxu0 0.0
      %538 = vmatprep.subr.mxu0 0.0
      %539 = vmatpush1.msra.mxu0 0.0
      %540 = vmatprep.subr.mxu0 0.0
      %541 = vmatpush1.msra.mxu0 0.0
      %542 = vmatprep.subr.mxu0 0.0
      %543 = vmatpush1.msra.mxu0 0.0
      %544 = vmatprep.subr.mxu0 0.0
      %545 = vmatpush1.msra.mxu0 0.0
      %546 = vmatprep.subr.mxu0 0.0
      %547 = vmatpush1.msra.mxu0 0.0
      %548 = vmatprep.subr.mxu0 0.0
      %549 = vmatpush1.msra.mxu0 0.0
      %550 = vmatprep.subr.mxu0 0.0
      %551 = vmatpush1.msra.mxu0 0.0
      %552 = vmatprep.subr.mxu0 0.0
      %553 = vmatpush1.msra.mxu0 0.0
      %554 = vmatprep.subr.mxu0 0.0
      %555 = vmatpush1.msra.mxu0 0.0
      %556 = vmatprep.subr.mxu0 0.0
      %557 = vmatpush1.msra.mxu0 0.0
      %558 = vmatprep.subr.mxu0 0.0
      %559 = vmatpush1.msra.mxu0 0.0
      %560 = vmatprep.subr.mxu0 0.0
      %561 = vmatpush1.msra.mxu0 0.0
      %562 = vmatprep.subr.mxu0 0.0
      %563 = vmatpush1.msra.mxu0 0.0
      %564 = vmatprep.subr.mxu0 0.0
      %565 = vmatpush1.msra.mxu0 0.0
      %566 = vmatprep.subr.mxu0 0.0
      %567 = vmatpush1.msra.mxu0 0.0
      %568 = vmatprep.subr.mxu0 0.0
      %569 = vmatpush1.msra.mxu0 0.0
      %570 = vmatprep.subr.mxu0 0.0
      %571 = vmatpush1.msra.mxu0 0.0
      %572 = vmatprep.mubr.f32.mxu0 0.0
      %573 = vmatmul.mubr.f32.gmra.mrb[0].mxu0 %v500
      %v574 = vpop.f32.mrb[0].mxu0
      %v575 = vadd.f32 %v496, %v574
      %v576 = vpop.f32.mrb[0].mxu0
      %v577 = vadd.f32 %v496, %v576
      %578 = vdwg.mxu0
      %v579 = vadd.f32 %v575, %v577
      %580 = vadd.xlane.f32.xlu0 %v579
      %v581 = vpop.xlane.xlu0 %580
      %v582 = vrot.slane %v581, 4
      %v583 = vadd.f32 %v581, %v582
      %v584 = vrot.slane %v583, 2
      %v585 = vadd.f32 %v583, %v584
      %v586 = vrot.slane %v585, 1
      %v587 = vadd.f32 %v585, %v586
      %s588 = vtos %v587
      %v589 = vrcp.pop 2048.0
      %s590 = vtos %v589
      %s591 = smul.f32 %s588, %s590
      %v592 = vmul.f32 %v575, %v575
      %v593 = vmul.f32 %v577, %v577
      %v594 = vadd.f32 %v592, %v593
      %595 = vadd.xlane.f32.xlu0 %v594
      %v596 = vpop.xlane.xlu0 %595
      %v597 = vrot.slane %v596, 4
      %v598 = vadd.f32 %v596, %v597
      %v599 = vrot.slane %v598, 2
      %v600 = vadd.f32 %v598, %v599
      %v601 = vrot.slane %v600, 1
      %v602 = vadd.f32 %v600, %v601
      %s603 = vtos %v602
      %v604 = vrcp.pop 2048.0
      %s605 = vtos %v604
      %s606 = smul.f32 %s603, %s605
      %s607 = smul.f32 %s591, %s591
      %s608 = ssub.f32 %s606, %s607
      %v609 = vstv %s591
      %v610 = vsub.f32 %v575, %v609
      %v611 = vsub.f32 %v577, %v609
      %s612 = sadd.f32 %s608, 1e-05
      %v613 = vstv %s612
      %v614 = vrsqrt.pop %v613
      %s615 = vtos %v614
      %v616 = vstv %s615
      %v617 = vmul.f32 %v610, %v616
      %v618 = vmul.f32 %v611, %v616
      %619 = vset.pattern.permute.xlu0 1
      %620 = vperm.xlu0 %619, %v259
      %v621 = vpop.permute.xlu0 %620
      %v623 = vmul.f32 %v617, %v621
      %v624 = vmul.f32 %v618, %v621
      %625 = vset.pattern.permute.xlu0 2
      %626 = vperm.xlu0 %625, %v259
      %v627 = vpop.permute.xlu0 %626
      %v629 = vadd.f32 %v623, %v627
      %v630 = vadd.f32 %v624, %v627
      %vm631 = vcmp.ge.f32.partialorder %v629, 0.0
      %vm632 = vcmp.ge.f32.partialorder %v630, 0.0
      %633 = vset.pattern.permute.xlu0 3
      %634 = vperm.xlu0 %633, %v259
      %v635 = vpop.permute.xlu0 %634
      %v637 = vmul.f32 %v635, %v629
      %v638 = vmul.f32 %v635, %v630
      %v639 = vsel %vm631, %v629, %v637
      %v640 = vsel %vm632, %v630, %v638
      %v641 = vld [vmem:[%s3] sm:$0xff]
      %v642 = vld [vmem:[%s5] sm:$0xff]
      %vm643 = vcmask 130048
      %644 = vst.msk [vmem:[#allocation3] sm:$0xff] %vm643, 0.0
      %vm645 = vcmask 523648
      %646 = vst.msk [vmem:[#allocation3 + $0x10] sm:$0xff] %vm645, 0.0
      %vm647 = vcmask 261248
      %648 = vst.msk [vmem:[#allocation3] sm:$0xff] %vm647, %v639
      %651 = vrot.lane.b32.xlu0 %v639, 32
      %v652 = vpop.permute.xlu0 %651
      %653 = vrot.lane.b32.xlu0 %v640, 32
      %v654 = vpop.permute.xlu0 %653
      %v655 = vsel %vm270, %v652, %v654
      %vm659 = vcmask 1047808
      %660 = vst.msk [vmem:[#allocation3] sm:$0xff] %vm659, %v652
      %661 = vst [vmem:[#allocation3 + $0x8] sm:$0xff] %v655
      %662 = vst.msk [vmem:[#allocation3 + $0x10] sm:$0xff] %vm270, %v654
      %663 = vrot.lane.b32.xlu0 %v640, 64
      %v664 = vpop.permute.xlu0 %663
      %vm666 = vcmask 392448
      %667 = vst.msk [vmem:[#allocation3 + $0x10] sm:$0xff] %vm666, %v664
      %v668 = vld [vmem:[#allocation3] sm:$0xff]
      %v669 = vld [vmem:[#allocation3 + $0x8] sm:$0xff]
      %v670 = vld [vmem:[#allocation3 + $0x10] sm:$0xff]
      %674 = vrot.lane.b32.xlu0 %v668, 111
      %v675 = vpop.permute.xlu0 %674
      %676 = vrot.lane.b32.xlu0 %v669, 111
      %v677 = vpop.permute.xlu0 %676
      %678 = vrot.lane.b32.xlu0 %v670, 111
      %v679 = vpop.permute.xlu0 %678
      %v680 = vsel %vm308, %v675, %v677
      %v681 = vsel %vm308, %v677, %v679
      %v684 = vmul.f32 %v292, %v680
      %v685 = vmul.f32 %v296, %v681
      %686 = vrot.lane.b32.xlu0 %v668, 113
      %v687 = vpop.permute.xlu0 %686
      %688 = vrot.lane.b32.xlu0 %v669, 113
      %v689 = vpop.permute.xlu0 %688
      %690 = vrot.lane.b32.xlu0 %v670, 113
      %v691 = vpop.permute.xlu0 %690
      %v692 = vsel %vm332, %v687, %v689
      %v693 = vsel %vm332, %v689, %v691
      %v696 = vmul.f32 %v319, %v692
      %v697 = vmul.f32 %v323, %v693
      %v698 = vadd.f32 %v684, %v696
      %v699 = vadd.f32 %v685, %v697
      %v700 = vmul.f32 %v345, %v692
      %v701 = vmul.f32 %v349, %v693
      %v702 = vmul.f32 %v358, %v680
      %v703 = vmul.f32 %v362, %v681
      %v704 = vadd.f32 %v700, %v702
      %v705 = vadd.f32 %v701, %v703
      %706 = vrot.lane.b32.xlu0 %v668, 95
      %v707 = vpop.permute.xlu0 %706
      %708 = vrot.lane.b32.xlu0 %v669, 95
      %v709 = vpop.permute.xlu0 %708
      %710 = vrot.lane.b32.xlu0 %v670, 95
      %v711 = vpop.permute.xlu0 %710
      %v712 = vsel %vm375, %v707, %v709
      %v713 = vsel %vm375, %v709, %v711
      %v716 = vmul.f32 %v292, %v712
      %v717 = vmul.f32 %v296, %v713
      %718 = vrot.lane.b32.xlu0 %v668, 97
      %v719 = vpop.permute.xlu0 %718
      %720 = vrot.lane.b32.xlu0 %v669, 97
      %v721 = vpop.permute.xlu0 %720
      %722 = vrot.lane.b32.xlu0 %v670, 97
      %v723 = vpop.permute.xlu0 %722
      %v724 = vsel %vm388, %v719, %v721
      %v725 = vsel %vm388, %v721, %v723
      %v728 = vmul.f32 %v319, %v724
      %v729 = vmul.f32 %v323, %v725
      %v730 = vadd.f32 %v716, %v728
      %v731 = vadd.f32 %v717, %v729
      %v732 = vmul.f32 %v345, %v724
      %v733 = vmul.f32 %v349, %v725
      %v734 = vmul.f32 %v358, %v712
      %v735 = vmul.f32 %v362, %v713
      %v736 = vadd.f32 %v732, %v734
      %v737 = vadd.f32 %v733, %v735
      %738 = vrot.lane.b32.xlu0 %v668, 79
      %v739 = vpop.permute.xlu0 %738
      %740 = vrot.lane.b32.xlu0 %v669, 79
      %v741 = vpop.permute.xlu0 %740
      %742 = vrot.lane.b32.xlu0 %v670, 79
      %v743 = vpop.permute.xlu0 %742
      %v744 = vsel %vm409, %v739, %v741
      %v745 = vsel %vm409, %v741, %v743
      %v748 = vmul.f32 %v292, %v744
      %v749 = vmul.f32 %v296, %v745
      %750 = vrot.lane.b32.xlu0 %v668, 81
      %v751 = vpop.permute.xlu0 %750
      %752 = vrot.lane.b32.xlu0 %v669, 81
      %v753 = vpop.permute.xlu0 %752
      %754 = vrot.lane.b32.xlu0 %v670, 81
      %v755 = vpop.permute.xlu0 %754
      %v756 = vsel %vm422, %v751, %v753
      %v757 = vsel %vm422, %v753, %v755
      %v760 = vmul.f32 %v319, %v756
      %v761 = vmul.f32 %v323, %v757
      %v762 = vadd.f32 %v748, %v760
      %v763 = vadd.f32 %v749, %v761
      %v764 = vmul.f32 %v345, %v756
      %v765 = vmul.f32 %v349, %v757
      %v766 = vmul.f32 %v358, %v744
      %v767 = vmul.f32 %v362, %v745
      %v768 = vadd.f32 %v764, %v766
      %v769 = vadd.f32 %v765, %v767
      %770 = vrot.lane.b32.xlu0 %v668, 112
      %v771 = vpop.permute.xlu0 %770
      %772 = vrot.lane.b32.xlu0 %v669, 112
      %v773 = vpop.permute.xlu0 %772
      %774 = vrot.lane.b32.xlu0 %v670, 112
      %v775 = vpop.permute.xlu0 %774
      %v776 = vsel %vm445, %v771, %v773
      %v777 = vsel %vm445, %v773, %v775
      %780 = vrot.lane.b32.xlu0 %v668, 96
      %v781 = vpop.permute.xlu0 %780
      %782 = vrot.lane.b32.xlu0 %v669, 96
      %v783 = vpop.permute.xlu0 %782
      %784 = vrot.lane.b32.xlu0 %v670, 96
      %v785 = vpop.permute.xlu0 %784
      %v786 = vsel %vm462, %v781, %v783
      %v787 = vsel %vm462, %v783, %v785
      %790 = vrot.lane.b32.xlu0 %v668, 80
      %v791 = vpop.permute.xlu0 %790
      %792 = vrot.lane.b32.xlu0 %v669, 80
      %v793 = vpop.permute.xlu0 %792
      %794 = vrot.lane.b32.xlu0 %v670, 80
      %v795 = vpop.permute.xlu0 %794
      %v796 = vsel %vm479, %v791, %v793
      %v797 = vsel %vm479, %v793, %v795
      %801 = vset.pattern.permute.xlu0 4
      %802 = vperm.xlu0 %801, %v642
      %v803 = vpop.permute.xlu0 %802
      %vm805 = vcmask 588800
      %v807 = vsel %vm805, %v641, 0
      %809 = vmatprep.subr.mxu0 %v699
      %810 = vmatpush1.msra.mxu0 %v698
      %811 = vmatprep.subr.mxu0 %v777
      %812 = vmatpush1.msra.mxu0 %v776
      %813 = vmatprep.subr.mxu0 %v705
      %814 = vmatpush1.msra.mxu0 %v704
      %815 = vmatprep.subr.mxu0 %v731
      %816 = vmatpush1.msra.mxu0 %v730
      %817 = vmatprep.subr.mxu0 %v787
      %818 = vmatpush1.msra.mxu0 %v786
      %819 = vmatprep.subr.mxu0 %v737
      %820 = vmatpush1.msra.mxu0 %v736
      %821 = vmatprep.subr.mxu0 %v763
      %822 = vmatpush1.msra.mxu0 %v762
      %823 = vmatprep.subr.mxu0 %v797
      %824 = vmatpush1.msra.mxu0 %v796
      %825 = vmatprep.subr.mxu0 %v769
      %826 = vmatpush1.msra.mxu0 %v768
      %827 = vmatprep.subr.mxu0 0.0
      %828 = vmatpush1.msra.mxu0 0.0
      %829 = vmatprep.subr.mxu0 0.0
      %830 = vmatpush1.msra.mxu0 0.0
      %831 = vmatprep.subr.mxu0 0.0
      %832 = vmatpush1.msra.mxu0 0.0
      %833 = vmatprep.subr.mxu0 0.0
      %834 = vmatpush1.msra.mxu0 0.0
      %835 = vmatprep.subr.mxu0 0.0
      %836 = vmatpush1.msra.mxu0 0.0
      %837 = vmatprep.subr.mxu0 0.0
      %838 = vmatpush1.msra.mxu0 0.0
      %839 = vmatprep.subr.mxu0 0.0
      %840 = vmatpush1.msra.mxu0 0.0
      %841 = vmatprep.subr.mxu0 0.0
      %842 = vmatpush1.msra.mxu0 0.0
      %843 = vmatprep.subr.mxu0 0.0
      %844 = vmatpush1.msra.mxu0 0.0
      %845 = vmatprep.subr.mxu0 0.0
      %846 = vmatpush1.msra.mxu0 0.0
      %847 = vmatprep.subr.mxu0 0.0
      %848 = vmatpush1.msra.mxu0 0.0
      %849 = vmatprep.subr.mxu0 0.0
      %850 = vmatpush1.msra.mxu0 0.0
      %851 = vmatprep.subr.mxu0 0.0
      %852 = vmatpush1.msra.mxu0 0.0
      %853 = vmatprep.subr.mxu0 0.0
      %854 = vmatpush1.msra.mxu0 0.0
      %855 = vmatprep.subr.mxu0 0.0
      %856 = vmatpush1.msra.mxu0 0.0
      %857 = vmatprep.subr.mxu0 0.0
      %858 = vmatpush1.msra.mxu0 0.0
      %859 = vmatprep.subr.mxu0 0.0
      %860 = vmatpush1.msra.mxu0 0.0
      %861 = vmatprep.subr.mxu0 0.0
      %862 = vmatpush1.msra.mxu0 0.0
      %863 = vmatprep.subr.mxu0 0.0
      %864 = vmatpush1.msra.mxu0 0.0
      %865 = vmatprep.subr.mxu0 0.0
      %866 = vmatpush1.msra.mxu0 0.0
      %867 = vmatprep.subr.mxu0 0.0
      %868 = vmatpush1.msra.mxu0 0.0
      %869 = vmatprep.subr.mxu0 0.0
      %870 = vmatpush1.msra.mxu0 0.0
      %871 = vmatprep.subr.mxu0 0.0
      %872 = vmatpush1.msra.mxu0 0.0
      %873 = vmatprep.mubr.f32.mxu0 0.0
      %874 = vmatmul.mubr.f32.gmra.mrb[0].mxu0 %v807
      %v875 = vpop.f32.mrb[0].mxu0
      %v876 = vadd.f32 %v803, %v875
      %v877 = vpop.f32.mrb[0].mxu0
      %v878 = vadd.f32 %v803, %v877
      %879 = vdwg.mxu0
      %v880 = vadd.f32 %v876, %v878
      %881 = vadd.xlane.f32.xlu0 %v880
      %v882 = vpop.xlane.xlu0 %881
      %v883 = vrot.slane %v882, 4
      %v884 = vadd.f32 %v882, %v883
      %v885 = vrot.slane %v884, 2
      %v886 = vadd.f32 %v884, %v885
      %v887 = vrot.slane %v886, 1
      %v888 = vadd.f32 %v886, %v887
      %s889 = vtos %v888
      %v890 = vrcp.pop 2048.0
      %s891 = vtos %v890
      %s892 = smul.f32 %s889, %s891
      %v893 = vmul.f32 %v876, %v876
      %v894 = vmul.f32 %v878, %v878
      %v895 = vadd.f32 %v893, %v894
      %896 = vadd.xlane.f32.xlu0 %v895
      %v897 = vpop.xlane.xlu0 %896
      %v898 = vrot.slane %v897, 4
      %v899 = vadd.f32 %v897, %v898
      %v900 = vrot.slane %v899, 2
      %v901 = vadd.f32 %v899, %v900
      %v902 = vrot.slane %v901, 1
      %v903 = vadd.f32 %v901, %v902
      %s904 = vtos %v903
      %v905 = vrcp.pop 2048.0
      %s906 = vtos %v905
      %s907 = smul.f32 %s904, %s906
      %s908 = smul.f32 %s892, %s892
      %s909 = ssub.f32 %s907, %s908
      %v910 = vstv %s892
      %v911 = vsub.f32 %v876, %v910
      %v912 = vsub.f32 %v878, %v910
      %s913 = sadd.f32 %s909, 1e-05
      %v914 = vstv %s913
      %v915 = vrsqrt.pop %v914
      %s916 = vtos %v915
      %v917 = vstv %s916
      %v918 = vmul.f32 %v911, %v917
      %v919 = vmul.f32 %v912, %v917
      %920 = vset.pattern.permute.xlu0 5
      %921 = vperm.xlu0 %920, %v642
      %v922 = vpop.permute.xlu0 %921
      %v924 = vmul.f32 %v918, %v922
      %v925 = vmul.f32 %v919, %v922
      %926 = vset.pattern.permute.xlu0 6
      %927 = vperm.xlu0 %926, %v642
      %v928 = vpop.permute.xlu0 %927
      %v930 = vadd.f32 %v924, %v928
      %v931 = vadd.f32 %v925, %v928
      %vm932 = vcmp.ge.f32.partialorder %v930, 0.0
      %vm933 = vcmp.ge.f32.partialorder %v931, 0.0
      %934 = vset.pattern.permute.xlu0 7
      %935 = vperm.xlu0 %934, %v642
      %v936 = vpop.permute.xlu0 %935
      %v938 = vmul.f32 %v936, %v930
      %v939 = vmul.f32 %v936, %v931
      %v940 = vsel %vm932, %v930, %v938
      %v941 = vsel %vm933, %v931, %v939
      %942 = vst [vmem:[#allocation4] sm:$0xff] %v940
      %943 = vst [vmem:[#allocation4 + $0x8] sm:$0xff] %v941
      %944 = vst.msk [vmem:[#allocation4 + $0x10] sm:$0xff] %vm270, 0.0
      %v945 = vld [vmem:[#allocation4] sm:$0xff]
      %v946 = vld [vmem:[#allocation4 + $0x8] sm:$0xff]
      %v947 = vld [vmem:[#allocation4 + $0x10] sm:$0xff]
      %951 = vrot.lane.b32.xlu0 %v945, 127
      %v952 = vpop.permute.xlu0 %951
      %953 = vrot.lane.b32.xlu0 %v946, 127
      %v954 = vpop.permute.xlu0 %953
      %955 = vrot.lane.b32.xlu0 %v947, 127
      %v956 = vpop.permute.xlu0 %955
      %vm957 = vcmask 1039360
      %v958 = vsel %vm957, %v952, %v954
      %v959 = vsel %vm957, %v954, %v956
      %v962 = vmul.f32 %v358, %v958
      %v963 = vmul.f32 %v362, %v959
      %964 = vrot.lane.b32.xlu0 %v945, 111
      %v965 = vpop.permute.xlu0 %964
      %966 = vrot.lane.b32.xlu0 %v946, 111
      %v967 = vpop.permute.xlu0 %966
      %968 = vrot.lane.b32.xlu0 %v947, 111
      %v969 = vpop.permute.xlu0 %968
      %v970 = vsel %vm308, %v965, %v967
      %v971 = vsel %vm308, %v967, %v969
      %v974 = vmul.f32 %v358, %v970
      %v975 = vmul.f32 %v362, %v971
      %976 = vrot.lane.b32.xlu0 %v945, 112
      %v977 = vpop.permute.xlu0 %976
      %978 = vrot.lane.b32.xlu0 %v946, 112
      %v979 = vpop.permute.xlu0 %978
      %980 = vrot.lane.b32.xlu0 %v947, 112
      %v981 = vpop.permute.xlu0 %980
      %v982 = vsel %vm445, %v977, %v979
      %v983 = vsel %vm445, %v979, %v981
      %v986 = vld [vmem:[%s4] sm:$0xff]
      %v987 = vld [vmem:[%s4 + $0x8] sm:$0xff]
      %v988 = vld [vmem:[%s4 + $0x10] sm:$0xff]
      %v989 = vld [vmem:[%s4 + $0x18] sm:$0xff]
      %v991 = vsel %vm270, %v986, 0
      %v994 = vsel %vm270, %v987, 0
      %v997 = vsel %vm270, %v988, 0
      %v1000 = vsel %vm270, %v989, 0
      %1002 = vmatprep.subr.mxu0 %v941
      %1003 = vmatpush1.msra.mxu0 %v940
      %1004 = vmatprep.subr.mxu0 %v963
      %1005 = vmatpush1.msra.mxu0 %v962
      %1006 = vmatprep.subr.mxu0 %v983
      %1007 = vmatpush1.msra.mxu0 %v982
      %1008 = vmatprep.subr.mxu0 %v975
      %1009 = vmatpush1.msra.mxu0 %v974
      %1010 = vmatprep.subr.mxu0 0.0
      %1011 = vmatpush1.msra.mxu0 0.0
      %1012 = vmatprep.subr.mxu0 0.0
      %1013 = vmatpush1.msra.mxu0 0.0
      %1014 = vmatprep.subr.mxu0 0.0
      %1015 = vmatpush1.msra.mxu0 0.0
      %1016 = vmatprep.subr.mxu0 0.0
      %1017 = vmatpush1.msra.mxu0 0.0
      %1018 = vmatprep.subr.mxu0 0.0
      %1019 = vmatpush1.msra.mxu0 0.0
      %1020 = vmatprep.subr.mxu0 0.0
      %1021 = vmatpush1.msra.mxu0 0.0
      %1022 = vmatprep.subr.mxu0 0.0
      %1023 = vmatpush1.msra.mxu0 0.0
      %1024 = vmatprep.subr.mxu0 0.0
      %1025 = vmatpush1.msra.mxu0 0.0
      %1026 = vmatprep.subr.mxu0 0.0
      %1027 = vmatpush1.msra.mxu0 0.0
      %1028 = vmatprep.subr.mxu0 0.0
      %1029 = vmatpush1.msra.mxu0 0.0
      %1030 = vmatprep.subr.mxu0 0.0
      %1031 = vmatpush1.msra.mxu0 0.0
      %1032 = vmatprep.subr.mxu0 0.0
      %1033 = vmatpush1.msra.mxu0 0.0
      %1034 = vmatprep.subr.mxu0 0.0
      %1035 = vmatpush1.msra.mxu0 0.0
      %1036 = vmatprep.subr.mxu0 0.0
      %1037 = vmatpush1.msra.mxu0 0.0
      %1038 = vmatprep.subr.mxu0 0.0
      %1039 = vmatpush1.msra.mxu0 0.0
      %1040 = vmatprep.subr.mxu0 0.0
      %1041 = vmatpush1.msra.mxu0 0.0
      %1042 = vmatprep.subr.mxu0 0.0
      %1043 = vmatpush1.msra.mxu0 0.0
      %1044 = vmatprep.subr.mxu0 0.0
      %1045 = vmatpush1.msra.mxu0 0.0
      %1046 = vmatprep.subr.mxu0 0.0
      %1047 = vmatpush1.msra.mxu0 0.0
      %1048 = vmatprep.subr.mxu0 0.0
      %1049 = vmatpush1.msra.mxu0 0.0
      %1050 = vmatprep.subr.mxu0 0.0
      %1051 = vmatpush1.msra.mxu0 0.0
      %1052 = vmatprep.subr.mxu0 0.0
      %1053 = vmatpush1.msra.mxu0 0.0
      %1054 = vmatprep.subr.mxu0 0.0
      %1055 = vmatpush1.msra.mxu0 0.0
      %1056 = vmatprep.subr.mxu0 0.0
      %1057 = vmatpush1.msra.mxu0 0.0
      %1058 = vmatprep.subr.mxu0 0.0
      %1059 = vmatpush1.msra.mxu0 0.0
      %1060 = vmatprep.subr.mxu0 0.0
      %1061 = vmatpush1.msra.mxu0 0.0
      %1062 = vmatprep.subr.mxu0 0.0
      %1063 = vmatpush1.msra.mxu0 0.0
      %1064 = vmatprep.subr.mxu0 0.0
      %1065 = vmatpush1.msra.mxu0 0.0
      %1066 = vmatprep.mubr.f32.mxu0 0.0
      %1067 = vmatmul.mubr.f32.gmra.mrb[0].mxu0 %v991
      %v1068 = vpop.f32.mrb[0].mxu0
      %v1069 = vadd.f32 0.0, %v1068
      %v1070 = vpop.f32.mrb[0].mxu0
      %v1071 = vadd.f32 0.0, %v1070
      %1072 = vmatprep.mubr.f32.mxu0 0.0
      %1073 = vmatmul.mubr.f32.gmra.mrb[0].mxu0 %v994
      %v1074 = vpop.f32.mrb[0].mxu0
      %v1075 = vadd.f32 0.0, %v1074
      %v1076 = vpop.f32.mrb[0].mxu0
      %v1077 = vadd.f32 0.0, %v1076
      %1078 = vmatprep.mubr.f32.mxu0 0.0
      %1079 = vmatmul.mubr.f32.gmra.mrb[0].mxu0 %v997
      %v1080 = vpop.f32.mrb[0].mxu0
      %v1081 = vadd.f32 0.0, %v1080
      %v1082 = vpop.f32.mrb[0].mxu0
      %v1083 = vadd.f32 0.0, %v1082
      %1084 = vmatprep.mubr.f32.mxu0 0.0
      %1085 = vmatmul.mubr.f32.gmra.mrb[0].mxu0 %v1000
      %v1086 = vpop.f32.mrb[0].mxu0
      %v1087 = vadd.f32 0.0, %v1086
      %v1088 = vpop.f32.mrb[0].mxu0
      %v1089 = vadd.f32 0.0, %v1088
      %1090 = vdwg.mxu0
      %v1091 = vld [vmem:[%s5] sm:$0xff]
      %1093 = vset.pattern.permute.xlu0 8
      %1094 = vperm.xlu0 %1093, %v1091
      %v1095 = vpop.permute.xlu0 %1094
      %v1097 = vadd.f32 %v1069, %v1095
      %v1098 = vadd.f32 %v1071, %v1095
      %1099 = vst [vmem:[%s251] sm:$0xff] %v1097
      %1100 = vst [vmem:[%s251 + $0x8] sm:$0xff] %v1098
      %v1101 = vadd.f32 %v1075, %v1095
      %v1102 = vadd.f32 %v1077, %v1095
      %s1103 = scalar_lea.vmem %s251, 16
      %1104 = vst [vmem:[%s1103] sm:$0xff] %v1101
      %1105 = vst [vmem:[%s1103 + $0x8] sm:$0xff] %v1102
      %v1106 = vadd.f32 %v1081, %v1095
      %v1107 = vadd.f32 %v1083, %v1095
      %s1108 = scalar_lea.vmem %s251, 32
      %1109 = vst [vmem:[%s1108] sm:$0xff] %v1106
      %1110 = vst [vmem:[%s1108 + $0x8] sm:$0xff] %v1107
      %v1111 = vadd.f32 %v1087, %v1095
      %v1112 = vadd.f32 %v1089, %v1095
      %s1113 = scalar_lea.vmem %s251, 48
      %1114 = vst [vmem:[%s1113] sm:$0xff] %v1111
      %1115 = vst [vmem:[%s1113 + $0x8] sm:$0xff] %v1112
      %p1116 = scmp.lt.s32.totalorder %s17, 1
      %s1117 = scalar_select %p1116, %s17, 1
      %s1118 = smul.addr %s1117, 8
      %s1119 = smul.addr %s1118, 8
      %s1120 = scalar_lea.vmem %s6, %s1119
      // Predicated region
      $region45: #{upblock_forward.1} parent=43 // pred_check
        %p1121 = pneg %p166
      $region46: #{upblock_forward.1} parent=43 // pred_check_branch
        %1123 = sbr.rel (%p1121) target = $region48
      $region47: #{upblock_forward.1} parent=43 // pred_region
        _
      $region48: #{upblock_forward.1} parent=43 // pred_fallthru
        _
    $region44: #{upblock_forward.1} parent=5 // pred_fallthru
      _
    %p1124 = scmp.le.s32.totalorder 2, %s12
    // Predicated region
    $region49: #{upblock_forward.1} parent=5 // pred_check
      %p1125 = pneg %p1124
    $region50: #{upblock_forward.1} parent=5 // pred_check_branch
      %1127 = sbr.rel (%p1125) target = $region52
    $region51: #{upblock_forward.1} parent=5 // pred_region
      %s1128 = ssub.s32 %s12, 2
      // Predicated region
      $region53: #{upblock_forward.1} parent=51 // pred_check
        %p1129 = pneg %p172
      $region54: #{upblock_forward.1} parent=51 // pred_check_branch
        %1131 = sbr.rel (%p1129) target = $region56
      $region55: #{upblock_forward.1} parent=51 // pred_region
        %p1132 = scmp.lt.s32.totalorder %s18, 1
        %s1133 = scalar_select %p1132, %s18, 1
        %s1134 = smul.addr %s1133, 8
        %s1135 = smul.addr %s1134, 8
        %s1136 = scalar_lea.vmem %s6, %s1135
      $region56: #{upblock_forward.1} parent=51 // pred_fallthru
        _
    $region52: #{upblock_forward.1} parent=5 // pred_fallthru
      _
  $region6: #{upblock_forward.1} parent=0 // loop_footer
    %s16 = sadd.s32 1, %s12
  $region7: #{upblock_forward.1} parent=0 // loop_footer_branch
    %11 = sbr.rel target = $region3
  $region8: #{upblock_forward.1} parent=0 // loop_exit
    _

</llo_original>
